<compile_context>
chip_gen: v6e
topology: v6e:2x2x1
jax: 0.10.0
libtpu: 0.0.40
codegen_flags: <defaults>
</compile_context>

<pallas_src>
import functools

import jax
import jax.numpy as jnp
from jax import lax
from jax.experimental import pallas as pl
from jax.experimental.pallas import tpu as pltpu


def _lstm_gate_update(gates, c_prev, H):
    # Gate column order is [i, f, o, g] (init-time permutation of PyTorch's
    # [i, f, g, o]) -> one contiguous sigmoid over 3H columns, one tanh over H.
    sig = jax.nn.sigmoid(gates[:, :3 * H])
    i = sig[:, 0 * H:1 * H]
    f = sig[:, 1 * H:2 * H]
    o = sig[:, 2 * H:3 * H]
    g = jnp.tanh(gates[:, 3 * H:4 * H])
    c_new = f * c_prev + i * g
    h_new = o * jnp.tanh(c_new)
    return h_new, c_new


def _autoencoder_kernel(seq_len, hidden,
                        x_ref, wih_e, whh_e, b_e,
                        wih_d_hbm, whh_d_hbm, b_d, w_out, b_out,
                        out_ref,
                        wih_d_vmem, whh_d_vmem, dma_sem):
    H = hidden
    f32 = jnp.float32
    bf16 = jnp.bfloat16

    # Kick off the decoder-weight DMAs (HBM -> VMEM, bf16) so they overlap the
    # encoder recurrence.
    cp_wih_d = pltpu.make_async_copy(wih_d_hbm, wih_d_vmem, dma_sem.at[0])
    cp_whh_d = pltpu.make_async_copy(whh_d_hbm, whh_d_vmem, dma_sem.at[1])
    cp_wih_d.start()
    cp_whh_d.start()

    # ---------------- Encoder LSTM (input_size=1 -> H), batch = 1 -------------
    # All timestep input projections (+ combined bias) in one vectorized op,
    # off the serial recurrence chain: (seq_len,1)*(1,4H) -> (seq_len,4H), f32.
    xg_e = x_ref[...] * wih_e[...] + b_e[...]
    whh_e_v = whh_e[...]                              # (H, 4H) bf16, VMEM-resident

    h = jnp.zeros((1, H), f32)
    c = jnp.zeros((1, H), f32)
    for t in range(seq_len):                          # static unroll, vreg carry
        gates = xg_e[t:t + 1, :]
        if t > 0:                                     # h == 0 at t == 0
            gates = gates + jnp.dot(h.astype(bf16), whh_e_v,
                                    preferred_element_type=f32)
        h, c = _lstm_gate_update(gates, c, H)

    # Decoder input at every timestep is the constant final encoder hidden
    # state, so its projection + bias is computed once.  Only wih_d is needed.
    cp_wih_d.wait()
    xg_d = jnp.dot(h.astype(bf16), wih_d_vmem[...],
                   preferred_element_type=f32) + b_d[...]

    # ---------------- Decoder LSTM (H -> H) ------------------------------------
    # Step t=0 has h = c = 0, so gates == xg_d and whh_d is not needed yet.
    h, c = _lstm_gate_update(xg_d, jnp.zeros((1, H), f32), H)
    hs = [h]

    # whh_d is first used at t = 1; wait as late as possible.
    cp_whh_d.wait()
    whh_d_v = whh_d_vmem[...]                         # (H, 4H) bf16

    for t in range(1, seq_len):                       # static unroll, vreg carry
        gates = xg_d + jnp.dot(h.astype(bf16), whh_d_v,
                               preferred_element_type=f32)
        h, c = _lstm_gate_update(gates, c, H)
        hs.append(h)

    # TODO(synk): nn.Dropout(0.2) is identity in eval mode; training-mode random
    # masking is not implemented here.

    # ---------------- Output Linear (H -> 1) -----------------------------------
    # VPU broadcast-multiply + XLU lane reduction instead of a lane-sparse
    # (seq_len,H)@(H,1) MXU matmul.
    hs_all = jnp.concatenate(hs, axis=0)              # (seq_len, H) f32
    out_ref[...] = (jnp.sum(hs_all * w_out[...], axis=-1, keepdims=True)
                    + b_out[...])


def lstm_autoencoder_forward(x, params):
    seq_len = x.shape[0]
    H = params["whh_e"].shape[0]
    assert H % 128 == 0, "hidden_size must be a multiple of 128 (lane-aligned gates)"
    assert params["wih_e"].shape[0] == 1, "only input_size == 1 is supported"

    kernel = functools.partial(_autoencoder_kernel, seq_len, H)
    x2d = x.reshape(seq_len, 1).astype(jnp.float32)

    vmem = pl.BlockSpec(memory_space=pltpu.MemorySpace.VMEM)
    hbm = pl.BlockSpec(memory_space=pl.ANY)

    out = pl.pallas_call(
        kernel,
        out_shape=jax.ShapeDtypeStruct((seq_len, 1), jnp.float32),
        in_specs=[
            vmem,   # x            (seq_len, 1) f32
            vmem,   # wih_e        (1, 4H)  f32
            vmem,   # whh_e        (H, 4H)  bf16
            vmem,   # b_e          (1, 4H)  f32
            hbm,    # wih_d        (H, 4H)  bf16  -- manually DMA'd
            hbm,    # whh_d        (H, 4H)  bf16  -- manually DMA'd
            vmem,   # b_d          (1, 4H)  f32
            vmem,   # w_out        (1, H)   f32
            vmem,   # b_out        (1, 1)   f32
        ],
        out_specs=pl.BlockSpec(memory_space=pltpu.MemorySpace.VMEM),
        scratch_shapes=[
            pltpu.VMEM((H, 4 * H), jnp.bfloat16),   # wih_d landing buffer
            pltpu.VMEM((H, 4 * H), jnp.bfloat16),   # whh_d landing buffer
            pltpu.SemaphoreType.DMA((2,)),
        ],
    )(x2d, params["wih_e"], params["whh_e"], params["b_e"],
      params["wih_d"], params["whh_d"], params["b_d"],
      params["w_out"], params["b_out"])
    return out[:, 0]      # == torch squeeze() -> (seq_len,)


def init_params(key, input_size, embedding_size):
    """PyTorch-style U(-1/sqrt(H), 1/sqrt(H)) init.

    Returns (kernel_params, ref_params):
      kernel_params: gate columns permuted to [i,f,o,g], transposed to
                     (in_dim, 4H), recurrent/decoder weights in bf16.
      ref_params:    PyTorch gate order [i,f,g,o], f32, transposed.
    """
    assert input_size == 1, "module only supports input_size == 1"
    H = embedding_size * 2
    ks = jax.random.split(key, 10)
    bound = 1.0 / (H ** 0.5)

    def u(k, shape):
        return jax.random.uniform(k, shape, jnp.float32, -bound, bound)

    # Encoder LSTM1: input_size -> H
    W_ih_e = u(ks[0], (4 * H, input_size))
    W_hh_e = u(ks[1], (4 * H, H))
    b_e = u(ks[2], (4 * H,)) + u(ks[3], (4 * H,))     # b_ih + b_hh
    # Decoder LSTM2: H -> H
    W_ih_d = u(ks[4], (4 * H, H))
    W_hh_d = u(ks[5], (4 * H, H))
    b_d = u(ks[6], (4 * H,)) + u(ks[7], (4 * H,))
    # Output Linear: H -> 1
    W_out = u(ks[8], (1, H))
    b_out = u(ks[9], (1,))

    def reord(a):   # PyTorch [i, f, g, o]  ->  kernel [i, f, o, g] on axis 0
        return jnp.concatenate([a[:2 * H], a[3 * H:4 * H], a[2 * H:3 * H]], axis=0)

    kernel_params = {
        "wih_e": reord(W_ih_e).T,                          # (1, 4H)  f32
        "whh_e": reord(W_hh_e).T.astype(jnp.bfloat16),     # (H, 4H)  bf16
        "b_e":   reord(b_e)[None, :],                      # (1, 4H)  f32
        "wih_d": reord(W_ih_d).T.astype(jnp.bfloat16),     # (H, 4H)  bf16 (HBM)
        "whh_d": reord(W_hh_d).T.astype(jnp.bfloat16),     # (H, 4H)  bf16 (HBM)
        "b_d":   reord(b_d)[None, :],                      # (1, 4H)  f32
        "w_out": W_out,                                    # (1, H)   f32
        "b_out": b_out[None, :],                           # (1, 1)   f32
    }
    ref_params = {
        "wih_e": W_ih_e.T, "whh_e": W_hh_e.T, "b_e": b_e[None, :],
        "wih_d": W_ih_d.T, "whh_d": W_hh_d.T, "b_d": b_d[None, :],
        "w_out": W_out.T, "b_out": b_out[None, :],
    }
    return kernel_params, ref_params


def reference_forward(x, p, *, mirror_bf16=False):
    """Pure-JAX reference of the PyTorch forward (eval mode), gate order i,f,g,o.

    mirror_bf16=True applies the same bf16 casts to the recurrent / decoder
    input-projection matmuls as the kernel (f32 accumulation, f32 cell update).
    """
    H = p["whh_e"].shape[0]
    seq_len = x.shape[0]
    f32 = jnp.float32
    cast = (lambda a: a.astype(jnp.bfloat16)) if mirror_bf16 else (lambda a: a)

    def lstm(xs, wih, whh, b, cast_in):
        wih_m = cast(wih) if cast_in else wih
        whh_m = cast(whh)

        def step(carry, x_t):
            h, c = carry
            xp = jnp.dot(cast(x_t) if cast_in else x_t, wih_m,
                         preferred_element_type=f32)
            hp = jnp.dot(cast(h), whh_m, preferred_element_type=f32)
            gates = xp + hp + b
            i = jax.nn.sigmoid(gates[:, :H])
            f = jax.nn.sigmoid(gates[:, H:2 * H])
            g = jnp.tanh(gates[:, 2 * H:3 * H])
            o = jax.nn.sigmoid(gates[:, 3 * H:])
            c = f * c + i * g
            h = o * jnp.tanh(c)
            return (h, c), h

        init = (jnp.zeros((1, H), f32), jnp.zeros((1, H), f32))
        (h, _), hs = lax.scan(step, init, xs)
        return h, hs

    xs_e = x.reshape(seq_len, 1, 1).astype(f32)
    h_enc, _ = lstm(xs_e, p["wih_e"], p["whh_e"], p["b_e"], cast_in=False)
    xs_d = jnp.broadcast_to(h_enc, (seq_len, 1, H))
    _, hs = lstm(xs_d, p["wih_d"], p["whh_d"], p["b_d"], cast_in=True)
    hs = hs.reshape(seq_len, H)
    out = jnp.dot(hs, p["w_out"], preferred_element_type=f32) + p["b_out"]
    return out[:, 0]


if __name__ == "__main__":
    seq_len, input_size, embedding_size = 8, 1, 64   # hidden = 128
    key = jax.random.PRNGKey(0)
    kx, kp = jax.random.split(key)
    x = jax.random.normal(kx, (seq_len,), jnp.float32)
    kernel_params, ref_params = init_params(kp, input_size, embedding_size)

    out = jax.block_until_ready(lstm_autoencoder_forward(x, kernel_params))

    ref_mirror = reference_forward(x, ref_params, mirror_bf16=True)   # same casts
    ref_f32 = reference_forward(x, ref_params)                        # pure f32

    assert out.shape == (seq_len,), out.shape
    assert jnp.allclose(out, ref_mirror, atol=1e-3, rtol=0.0), (out, ref_mirror)
    assert jnp.allclose(out, ref_f32, atol=2e-2, rtol=0.0), (out, ref_f32)
    print("KERNEL_OK")
</pallas_src>

<mosaic_0001>
module attributes {stable_mosaic.version = 11 : i64} {
  func.func @_autoencoder_kernel(%arg0: memref<8x1xf32, #tpu.memory_space<vmem>>, %arg1: memref<1x512xf32, #tpu.memory_space<vmem>>, %arg2: memref<128x512xbf16, #tpu.memory_space<vmem>>, %arg3: memref<1x512xf32, #tpu.memory_space<vmem>>, %arg4: memref<128x512xbf16, #tpu.memory_space<any>>, %arg5: memref<128x512xbf16, #tpu.memory_space<any>>, %arg6: memref<1x512xf32, #tpu.memory_space<vmem>>, %arg7: memref<1x128xf32, #tpu.memory_space<vmem>>, %arg8: memref<1x1xf32, #tpu.memory_space<vmem>>, %arg9: memref<8x1xf32, #tpu.memory_space<vmem>>, %arg10: memref<128x512xbf16, #tpu.memory_space<vmem>>, %arg11: memref<128x512xbf16, #tpu.memory_space<vmem>>, %arg12: memref<2x!tpu.dma_semaphore, #tpu.memory_space<semaphore_mem>>) attributes {dimension_semantics = [], scalar_prefetch = 0 : i64, scratch_operands = 3 : i64, tpu.core_type = #tpu.core_type<tc>} {
    %c0_i32 = arith.constant 0 : i32
    %0 = tpu.memref_slice %arg12[%c0_i32] : memref<2x!tpu.dma_semaphore, #tpu.memory_space<semaphore_mem>> -> memref<1x!tpu.dma_semaphore, #tpu.memory_space<semaphore_mem>>
    %1 = tpu.memref_squeeze %0 : memref<1x!tpu.dma_semaphore, #tpu.memory_space<semaphore_mem>> -> memref<!tpu.dma_semaphore, #tpu.memory_space<semaphore_mem>>
    tpu.enqueue_dma source(%arg4 : memref<128x512xbf16, #tpu.memory_space<any>>) target(%arg10 : memref<128x512xbf16, #tpu.memory_space<vmem>>) target_semaphore(%1 : memref<!tpu.dma_semaphore, #tpu.memory_space<semaphore_mem>>)
    %c1_i32 = arith.constant 1 : i32
    %2 = tpu.memref_slice %arg12[%c1_i32] : memref<2x!tpu.dma_semaphore, #tpu.memory_space<semaphore_mem>> -> memref<1x!tpu.dma_semaphore, #tpu.memory_space<semaphore_mem>>
    %3 = tpu.memref_squeeze %2 : memref<1x!tpu.dma_semaphore, #tpu.memory_space<semaphore_mem>> -> memref<!tpu.dma_semaphore, #tpu.memory_space<semaphore_mem>>
    tpu.enqueue_dma source(%arg5 : memref<128x512xbf16, #tpu.memory_space<any>>) target(%arg11 : memref<128x512xbf16, #tpu.memory_space<vmem>>) target_semaphore(%3 : memref<!tpu.dma_semaphore, #tpu.memory_space<semaphore_mem>>)
    %c0 = arith.constant 0 : index
    %c0_0 = arith.constant 0 : index
    %4 = vector.load %arg0[%c0, %c0_0] : memref<8x1xf32, #tpu.memory_space<vmem>>, vector<8x1xf32>
    %c0_1 = arith.constant 0 : index
    %c0_2 = arith.constant 0 : index
    %5 = vector.load %arg1[%c0_1, %c0_2] : memref<1x512xf32, #tpu.memory_space<vmem>>, vector<1x512xf32>
    %6 = vector.broadcast %4 : vector<8x1xf32> to vector<8x512xf32>
    %7 = vector.broadcast %5 : vector<1x512xf32> to vector<8x512xf32>
    %8 = arith.mulf %6, %7 : vector<8x512xf32>
    %c0_3 = arith.constant 0 : index
    %c0_4 = arith.constant 0 : index
    %9 = vector.load %arg3[%c0_3, %c0_4] : memref<1x512xf32, #tpu.memory_space<vmem>>, vector<1x512xf32>
    %10 = vector.broadcast %9 : vector<1x512xf32> to vector<8x512xf32>
    %11 = arith.addf %8, %10 : vector<8x512xf32>
    %c0_5 = arith.constant 0 : index
    %c0_6 = arith.constant 0 : index
    %12 = vector.load %arg2[%c0_5, %c0_6] : memref<128x512xbf16, #tpu.memory_space<vmem>>, vector<128x512xbf16>
    %cst = arith.constant 0.000000e+00 : f32
    %13 = vector.broadcast %cst : f32 to vector<1x128xf32>
    %14 = vector.extract_strided_slice %11 {offsets = [0, 0], sizes = [1, 512], strides = [1, 1]} : vector<8x512xf32> to vector<1x512xf32>
    %15 = vector.extract_strided_slice %14 {offsets = [0, 0], sizes = [1, 384], strides = [1, 1]} : vector<1x512xf32> to vector<1x384xf32>
    %16 = arith.negf %15 : vector<1x384xf32>
    %17 = math.exp %16 : vector<1x384xf32>
    %cst_7 = arith.constant 1.000000e+00 : f32
    %18 = vector.broadcast %cst_7 : f32 to vector<1x384xf32>
    %19 = arith.addf %18, %17 : vector<1x384xf32>
    %20 = arith.divf %18, %19 : vector<1x384xf32>
    %21 = vector.extract_strided_slice %20 {offsets = [0, 0], sizes = [1, 128], strides = [1, 1]} : vector<1x384xf32> to vector<1x128xf32>
    %22 = vector.extract_strided_slice %20 {offsets = [0, 128], sizes = [1, 128], strides = [1, 1]} : vector<1x384xf32> to vector<1x128xf32>
    %23 = vector.extract_strided_slice %20 {offsets = [0, 256], sizes = [1, 128], strides = [1, 1]} : vector<1x384xf32> to vector<1x128xf32>
    %24 = vector.extract_strided_slice %14 {offsets = [0, 384], sizes = [1, 128], strides = [1, 1]} : vector<1x512xf32> to vector<1x128xf32>
    %25 = math.tanh %24 : vector<1x128xf32>
    %26 = arith.mulf %22, %13 : vector<1x128xf32>
    %27 = arith.mulf %21, %25 : vector<1x128xf32>
    %28 = arith.addf %26, %27 : vector<1x128xf32>
    %29 = math.tanh %28 : vector<1x128xf32>
    %30 = arith.mulf %23, %29 : vector<1x128xf32>
    %31 = vector.extract_strided_slice %11 {offsets = [1, 0], sizes = [1, 512], strides = [1, 1]} : vector<8x512xf32> to vector<1x512xf32>
    %32 = arith.truncf %30 : vector<1x128xf32> to vector<1x128xbf16>
    %cst_8 = arith.constant dense<0.000000e+00> : vector<1x512xf32>
    %33 = tpu.matmul %32, %12, %cst_8 {dimension_numbers = #tpu.dot_dimension_numbers<[1], [0], [0], [1], [0, 0, 1, 1], [], []>} : vector<1x128xbf16>, vector<128x512xbf16>, vector<1x512xf32> -> vector<1x512xf32>
    %34 = arith.addf %31, %33 : vector<1x512xf32>
    %35 = vector.extract_strided_slice %34 {offsets = [0, 0], sizes = [1, 384], strides = [1, 1]} : vector<1x512xf32> to vector<1x384xf32>
    %36 = arith.negf %35 : vector<1x384xf32>
    %37 = math.exp %36 : vector<1x384xf32>
    %cst_9 = arith.constant 1.000000e+00 : f32
    %38 = vector.broadcast %cst_9 : f32 to vector<1x384xf32>
    %39 = arith.addf %38, %37 : vector<1x384xf32>
    %40 = arith.divf %38, %39 : vector<1x384xf32>
    %41 = vector.extract_strided_slice %40 {offsets = [0, 0], sizes = [1, 128], strides = [1, 1]} : vector<1x384xf32> to vector<1x128xf32>
    %42 = vector.extract_strided_slice %40 {offsets = [0, 128], sizes = [1, 128], strides = [1, 1]} : vector<1x384xf32> to vector<1x128xf32>
    %43 = vector.extract_strided_slice %40 {offsets = [0, 256], sizes = [1, 128], strides = [1, 1]} : vector<1x384xf32> to vector<1x128xf32>
    %44 = vector.extract_strided_slice %34 {offsets = [0, 384], sizes = [1, 128], strides = [1, 1]} : vector<1x512xf32> to vector<1x128xf32>
    %45 = math.tanh %44 : vector<1x128xf32>
    %46 = arith.mulf %42, %28 : vector<1x128xf32>
    %47 = arith.mulf %41, %45 : vector<1x128xf32>
    %48 = arith.addf %46, %47 : vector<1x128xf32>
    %49 = math.tanh %48 : vector<1x128xf32>
    %50 = arith.mulf %43, %49 : vector<1x128xf32>
    %51 = vector.extract_strided_slice %11 {offsets = [2, 0], sizes = [1, 512], strides = [1, 1]} : vector<8x512xf32> to vector<1x512xf32>
    %52 = arith.truncf %50 : vector<1x128xf32> to vector<1x128xbf16>
    %cst_10 = arith.constant dense<0.000000e+00> : vector<1x512xf32>
    %53 = tpu.matmul %52, %12, %cst_10 {dimension_numbers = #tpu.dot_dimension_numbers<[1], [0], [0], [1], [0, 0, 1, 1], [], []>} : vector<1x128xbf16>, vector<128x512xbf16>, vector<1x512xf32> -> vector<1x512xf32>
    %54 = arith.addf %51, %53 : vector<1x512xf32>
    %55 = vector.extract_strided_slice %54 {offsets = [0, 0], sizes = [1, 384], strides = [1, 1]} : vector<1x512xf32> to vector<1x384xf32>
    %56 = arith.negf %55 : vector<1x384xf32>
    %57 = math.exp %56 : vector<1x384xf32>
    %cst_11 = arith.constant 1.000000e+00 : f32
    %58 = vector.broadcast %cst_11 : f32 to vector<1x384xf32>
    %59 = arith.addf %58, %57 : vector<1x384xf32>
    %60 = arith.divf %58, %59 : vector<1x384xf32>
    %61 = vector.extract_strided_slice %60 {offsets = [0, 0], sizes = [1, 128], strides = [1, 1]} : vector<1x384xf32> to vector<1x128xf32>
    %62 = vector.extract_strided_slice %60 {offsets = [0, 128], sizes = [1, 128], strides = [1, 1]} : vector<1x384xf32> to vector<1x128xf32>
    %63 = vector.extract_strided_slice %60 {offsets = [0, 256], sizes = [1, 128], strides = [1, 1]} : vector<1x384xf32> to vector<1x128xf32>
    %64 = vector.extract_strided_slice %54 {offsets = [0, 384], sizes = [1, 128], strides = [1, 1]} : vector<1x512xf32> to vector<1x128xf32>
    %65 = math.tanh %64 : vector<1x128xf32>
    %66 = arith.mulf %62, %48 : vector<1x128xf32>
    %67 = arith.mulf %61, %65 : vector<1x128xf32>
    %68 = arith.addf %66, %67 : vector<1x128xf32>
    %69 = math.tanh %68 : vector<1x128xf32>
    %70 = arith.mulf %63, %69 : vector<1x128xf32>
    %71 = vector.extract_strided_slice %11 {offsets = [3, 0], sizes = [1, 512], strides = [1, 1]} : vector<8x512xf32> to vector<1x512xf32>
    %72 = arith.truncf %70 : vector<1x128xf32> to vector<1x128xbf16>
    %cst_12 = arith.constant dense<0.000000e+00> : vector<1x512xf32>
    %73 = tpu.matmul %72, %12, %cst_12 {dimension_numbers = #tpu.dot_dimension_numbers<[1], [0], [0], [1], [0, 0, 1, 1], [], []>} : vector<1x128xbf16>, vector<128x512xbf16>, vector<1x512xf32> -> vector<1x512xf32>
    %74 = arith.addf %71, %73 : vector<1x512xf32>
    %75 = vector.extract_strided_slice %74 {offsets = [0, 0], sizes = [1, 384], strides = [1, 1]} : vector<1x512xf32> to vector<1x384xf32>
    %76 = arith.negf %75 : vector<1x384xf32>
    %77 = math.exp %76 : vector<1x384xf32>
    %cst_13 = arith.constant 1.000000e+00 : f32
    %78 = vector.broadcast %cst_13 : f32 to vector<1x384xf32>
    %79 = arith.addf %78, %77 : vector<1x384xf32>
    %80 = arith.divf %78, %79 : vector<1x384xf32>
    %81 = vector.extract_strided_slice %80 {offsets = [0, 0], sizes = [1, 128], strides = [1, 1]} : vector<1x384xf32> to vector<1x128xf32>
    %82 = vector.extract_strided_slice %80 {offsets = [0, 128], sizes = [1, 128], strides = [1, 1]} : vector<1x384xf32> to vector<1x128xf32>
    %83 = vector.extract_strided_slice %80 {offsets = [0, 256], sizes = [1, 128], strides = [1, 1]} : vector<1x384xf32> to vector<1x128xf32>
    %84 = vector.extract_strided_slice %74 {offsets = [0, 384], sizes = [1, 128], strides = [1, 1]} : vector<1x512xf32> to vector<1x128xf32>
    %85 = math.tanh %84 : vector<1x128xf32>
    %86 = arith.mulf %82, %68 : vector<1x128xf32>
    %87 = arith.mulf %81, %85 : vector<1x128xf32>
    %88 = arith.addf %86, %87 : vector<1x128xf32>
    %89 = math.tanh %88 : vector<1x128xf32>
    %90 = arith.mulf %83, %89 : vector<1x128xf32>
    %91 = vector.extract_strided_slice %11 {offsets = [4, 0], sizes = [1, 512], strides = [1, 1]} : vector<8x512xf32> to vector<1x512xf32>
    %92 = arith.truncf %90 : vector<1x128xf32> to vector<1x128xbf16>
    %cst_14 = arith.constant dense<0.000000e+00> : vector<1x512xf32>
    %93 = tpu.matmul %92, %12, %cst_14 {dimension_numbers = #tpu.dot_dimension_numbers<[1], [0], [0], [1], [0, 0, 1, 1], [], []>} : vector<1x128xbf16>, vector<128x512xbf16>, vector<1x512xf32> -> vector<1x512xf32>
    %94 = arith.addf %91, %93 : vector<1x512xf32>
    %95 = vector.extract_strided_slice %94 {offsets = [0, 0], sizes = [1, 384], strides = [1, 1]} : vector<1x512xf32> to vector<1x384xf32>
    %96 = arith.negf %95 : vector<1x384xf32>
    %97 = math.exp %96 : vector<1x384xf32>
    %cst_15 = arith.constant 1.000000e+00 : f32
    %98 = vector.broadcast %cst_15 : f32 to vector<1x384xf32>
    %99 = arith.addf %98, %97 : vector<1x384xf32>
    %100 = arith.divf %98, %99 : vector<1x384xf32>
    %101 = vector.extract_strided_slice %100 {offsets = [0, 0], sizes = [1, 128], strides = [1, 1]} : vector<1x384xf32> to vector<1x128xf32>
    %102 = vector.extract_strided_slice %100 {offsets = [0, 128], sizes = [1, 128], strides = [1, 1]} : vector<1x384xf32> to vector<1x128xf32>
    %103 = vector.extract_strided_slice %100 {offsets = [0, 256], sizes = [1, 128], strides = [1, 1]} : vector<1x384xf32> to vector<1x128xf32>
    %104 = vector.extract_strided_slice %94 {offsets = [0, 384], sizes = [1, 128], strides = [1, 1]} : vector<1x512xf32> to vector<1x128xf32>
    %105 = math.tanh %104 : vector<1x128xf32>
    %106 = arith.mulf %102, %88 : vector<1x128xf32>
    %107 = arith.mulf %101, %105 : vector<1x128xf32>
    %108 = arith.addf %106, %107 : vector<1x128xf32>
    %109 = math.tanh %108 : vector<1x128xf32>
    %110 = arith.mulf %103, %109 : vector<1x128xf32>
    %111 = vector.extract_strided_slice %11 {offsets = [5, 0], sizes = [1, 512], strides = [1, 1]} : vector<8x512xf32> to vector<1x512xf32>
    %112 = arith.truncf %110 : vector<1x128xf32> to vector<1x128xbf16>
    %cst_16 = arith.constant dense<0.000000e+00> : vector<1x512xf32>
    %113 = tpu.matmul %112, %12, %cst_16 {dimension_numbers = #tpu.dot_dimension_numbers<[1], [0], [0], [1], [0, 0, 1, 1], [], []>} : vector<1x128xbf16>, vector<128x512xbf16>, vector<1x512xf32> -> vector<1x512xf32>
    %114 = arith.addf %111, %113 : vector<1x512xf32>
    %115 = vector.extract_strided_slice %114 {offsets = [0, 0], sizes = [1, 384], strides = [1, 1]} : vector<1x512xf32> to vector<1x384xf32>
    %116 = arith.negf %115 : vector<1x384xf32>
    %117 = math.exp %116 : vector<1x384xf32>
    %cst_17 = arith.constant 1.000000e+00 : f32
    %118 = vector.broadcast %cst_17 : f32 to vector<1x384xf32>
    %119 = arith.addf %118, %117 : vector<1x384xf32>
    %120 = arith.divf %118, %119 : vector<1x384xf32>
    %121 = vector.extract_strided_slice %120 {offsets = [0, 0], sizes = [1, 128], strides = [1, 1]} : vector<1x384xf32> to vector<1x128xf32>
    %122 = vector.extract_strided_slice %120 {offsets = [0, 128], sizes = [1, 128], strides = [1, 1]} : vector<1x384xf32> to vector<1x128xf32>
    %123 = vector.extract_strided_slice %120 {offsets = [0, 256], sizes = [1, 128], strides = [1, 1]} : vector<1x384xf32> to vector<1x128xf32>
    %124 = vector.extract_strided_slice %114 {offsets = [0, 384], sizes = [1, 128], strides = [1, 1]} : vector<1x512xf32> to vector<1x128xf32>
    %125 = math.tanh %124 : vector<1x128xf32>
    %126 = arith.mulf %122, %108 : vector<1x128xf32>
    %127 = arith.mulf %121, %125 : vector<1x128xf32>
    %128 = arith.addf %126, %127 : vector<1x128xf32>
    %129 = math.tanh %128 : vector<1x128xf32>
    %130 = arith.mulf %123, %129 : vector<1x128xf32>
    %131 = vector.extract_strided_slice %11 {offsets = [6, 0], sizes = [1, 512], strides = [1, 1]} : vector<8x512xf32> to vector<1x512xf32>
    %132 = arith.truncf %130 : vector<1x128xf32> to vector<1x128xbf16>
    %cst_18 = arith.constant dense<0.000000e+00> : vector<1x512xf32>
    %133 = tpu.matmul %132, %12, %cst_18 {dimension_numbers = #tpu.dot_dimension_numbers<[1], [0], [0], [1], [0, 0, 1, 1], [], []>} : vector<1x128xbf16>, vector<128x512xbf16>, vector<1x512xf32> -> vector<1x512xf32>
    %134 = arith.addf %131, %133 : vector<1x512xf32>
    %135 = vector.extract_strided_slice %134 {offsets = [0, 0], sizes = [1, 384], strides = [1, 1]} : vector<1x512xf32> to vector<1x384xf32>
    %136 = arith.negf %135 : vector<1x384xf32>
    %137 = math.exp %136 : vector<1x384xf32>
    %cst_19 = arith.constant 1.000000e+00 : f32
    %138 = vector.broadcast %cst_19 : f32 to vector<1x384xf32>
    %139 = arith.addf %138, %137 : vector<1x384xf32>
    %140 = arith.divf %138, %139 : vector<1x384xf32>
    %141 = vector.extract_strided_slice %140 {offsets = [0, 0], sizes = [1, 128], strides = [1, 1]} : vector<1x384xf32> to vector<1x128xf32>
    %142 = vector.extract_strided_slice %140 {offsets = [0, 128], sizes = [1, 128], strides = [1, 1]} : vector<1x384xf32> to vector<1x128xf32>
    %143 = vector.extract_strided_slice %140 {offsets = [0, 256], sizes = [1, 128], strides = [1, 1]} : vector<1x384xf32> to vector<1x128xf32>
    %144 = vector.extract_strided_slice %134 {offsets = [0, 384], sizes = [1, 128], strides = [1, 1]} : vector<1x512xf32> to vector<1x128xf32>
    %145 = math.tanh %144 : vector<1x128xf32>
    %146 = arith.mulf %142, %128 : vector<1x128xf32>
    %147 = arith.mulf %141, %145 : vector<1x128xf32>
    %148 = arith.addf %146, %147 : vector<1x128xf32>
    %149 = math.tanh %148 : vector<1x128xf32>
    %150 = arith.mulf %143, %149 : vector<1x128xf32>
    %151 = vector.extract_strided_slice %11 {offsets = [7, 0], sizes = [1, 512], strides = [1, 1]} : vector<8x512xf32> to vector<1x512xf32>
    %152 = arith.truncf %150 : vector<1x128xf32> to vector<1x128xbf16>
    %cst_20 = arith.constant dense<0.000000e+00> : vector<1x512xf32>
    %153 = tpu.matmul %152, %12, %cst_20 {dimension_numbers = #tpu.dot_dimension_numbers<[1], [0], [0], [1], [0, 0, 1, 1], [], []>} : vector<1x128xbf16>, vector<128x512xbf16>, vector<1x512xf32> -> vector<1x512xf32>
    %154 = arith.addf %151, %153 : vector<1x512xf32>
    %155 = vector.extract_strided_slice %154 {offsets = [0, 0], sizes = [1, 384], strides = [1, 1]} : vector<1x512xf32> to vector<1x384xf32>
    %156 = arith.negf %155 : vector<1x384xf32>
    %157 = math.exp %156 : vector<1x384xf32>
    %cst_21 = arith.constant 1.000000e+00 : f32
    %158 = vector.broadcast %cst_21 : f32 to vector<1x384xf32>
    %159 = arith.addf %158, %157 : vector<1x384xf32>
    %160 = arith.divf %158, %159 : vector<1x384xf32>
    %161 = vector.extract_strided_slice %160 {offsets = [0, 0], sizes = [1, 128], strides = [1, 1]} : vector<1x384xf32> to vector<1x128xf32>
    %162 = vector.extract_strided_slice %160 {offsets = [0, 128], sizes = [1, 128], strides = [1, 1]} : vector<1x384xf32> to vector<1x128xf32>
    %163 = vector.extract_strided_slice %160 {offsets = [0, 256], sizes = [1, 128], strides = [1, 1]} : vector<1x384xf32> to vector<1x128xf32>
    %164 = vector.extract_strided_slice %154 {offsets = [0, 384], sizes = [1, 128], strides = [1, 1]} : vector<1x512xf32> to vector<1x128xf32>
    %165 = math.tanh %164 : vector<1x128xf32>
    %166 = arith.mulf %162, %148 : vector<1x128xf32>
    %167 = arith.mulf %161, %165 : vector<1x128xf32>
    %168 = arith.addf %166, %167 : vector<1x128xf32>
    %169 = math.tanh %168 : vector<1x128xf32>
    %170 = arith.mulf %163, %169 : vector<1x128xf32>
    %c0_i32_22 = arith.constant 0 : i32
    %171 = tpu.memref_slice %arg12[%c0_i32_22] : memref<2x!tpu.dma_semaphore, #tpu.memory_space<semaphore_mem>> -> memref<1x!tpu.dma_semaphore, #tpu.memory_space<semaphore_mem>>
    %172 = tpu.memref_squeeze %171 : memref<1x!tpu.dma_semaphore, #tpu.memory_space<semaphore_mem>> -> memref<!tpu.dma_semaphore, #tpu.memory_space<semaphore_mem>>
    tpu.wait_dma2 semaphore(%172 : memref<!tpu.dma_semaphore, #tpu.memory_space<semaphore_mem>>) src(%arg4 : memref<128x512xbf16, #tpu.memory_space<any>>) dst(%arg10 : memref<128x512xbf16, #tpu.memory_space<vmem>>)
    %173 = arith.truncf %170 : vector<1x128xf32> to vector<1x128xbf16>
    %c0_23 = arith.constant 0 : index
    %c0_24 = arith.constant 0 : index
    %174 = vector.load %arg10[%c0_23, %c0_24] : memref<128x512xbf16, #tpu.memory_space<vmem>>, vector<128x512xbf16>
    %cst_25 = arith.constant dense<0.000000e+00> : vector<1x512xf32>
    %175 = tpu.matmul %173, %174, %cst_25 {dimension_numbers = #tpu.dot_dimension_numbers<[1], [0], [0], [1], [0, 0, 1, 1], [], []>} : vector<1x128xbf16>, vector<128x512xbf16>, vector<1x512xf32> -> vector<1x512xf32>
    %c0_26 = arith.constant 0 : index
    %c0_27 = arith.constant 0 : index
    %176 = vector.load %arg6[%c0_26, %c0_27] : memref<1x512xf32, #tpu.memory_space<vmem>>, vector<1x512xf32>
    %177 = arith.addf %175, %176 : vector<1x512xf32>
    %cst_28 = arith.constant 0.000000e+00 : f32
    %178 = vector.broadcast %cst_28 : f32 to vector<1x128xf32>
    %179 = vector.extract_strided_slice %177 {offsets = [0, 0], sizes = [1, 384], strides = [1, 1]} : vector<1x512xf32> to vector<1x384xf32>
    %180 = arith.negf %179 : vector<1x384xf32>
    %181 = math.exp %180 : vector<1x384xf32>
    %cst_29 = arith.constant 1.000000e+00 : f32
    %182 = vector.broadcast %cst_29 : f32 to vector<1x384xf32>
    %183 = arith.addf %182, %181 : vector<1x384xf32>
    %184 = arith.divf %182, %183 : vector<1x384xf32>
    %185 = vector.extract_strided_slice %184 {offsets = [0, 0], sizes = [1, 128], strides = [1, 1]} : vector<1x384xf32> to vector<1x128xf32>
    %186 = vector.extract_strided_slice %184 {offsets = [0, 128], sizes = [1, 128], strides = [1, 1]} : vector<1x384xf32> to vector<1x128xf32>
    %187 = vector.extract_strided_slice %184 {offsets = [0, 256], sizes = [1, 128], strides = [1, 1]} : vector<1x384xf32> to vector<1x128xf32>
    %188 = vector.extract_strided_slice %177 {offsets = [0, 384], sizes = [1, 128], strides = [1, 1]} : vector<1x512xf32> to vector<1x128xf32>
    %189 = math.tanh %188 : vector<1x128xf32>
    %190 = arith.mulf %186, %178 : vector<1x128xf32>
    %191 = arith.mulf %185, %189 : vector<1x128xf32>
    %192 = arith.addf %190, %191 : vector<1x128xf32>
    %193 = math.tanh %192 : vector<1x128xf32>
    %194 = arith.mulf %187, %193 : vector<1x128xf32>
    %c1_i32_30 = arith.constant 1 : i32
    %195 = tpu.memref_slice %arg12[%c1_i32_30] : memref<2x!tpu.dma_semaphore, #tpu.memory_space<semaphore_mem>> -> memref<1x!tpu.dma_semaphore, #tpu.memory_space<semaphore_mem>>
    %196 = tpu.memref_squeeze %195 : memref<1x!tpu.dma_semaphore, #tpu.memory_space<semaphore_mem>> -> memref<!tpu.dma_semaphore, #tpu.memory_space<semaphore_mem>>
    tpu.wait_dma2 semaphore(%196 : memref<!tpu.dma_semaphore, #tpu.memory_space<semaphore_mem>>) src(%arg5 : memref<128x512xbf16, #tpu.memory_space<any>>) dst(%arg11 : memref<128x512xbf16, #tpu.memory_space<vmem>>)
    %c0_31 = arith.constant 0 : index
    %c0_32 = arith.constant 0 : index
    %197 = vector.load %arg11[%c0_31, %c0_32] : memref<128x512xbf16, #tpu.memory_space<vmem>>, vector<128x512xbf16>
    %198 = arith.truncf %194 : vector<1x128xf32> to vector<1x128xbf16>
    %cst_33 = arith.constant dense<0.000000e+00> : vector<1x512xf32>
    %199 = tpu.matmul %198, %197, %cst_33 {dimension_numbers = #tpu.dot_dimension_numbers<[1], [0], [0], [1], [0, 0, 1, 1], [], []>} : vector<1x128xbf16>, vector<128x512xbf16>, vector<1x512xf32> -> vector<1x512xf32>
    %200 = arith.addf %177, %199 : vector<1x512xf32>
    %201 = vector.extract_strided_slice %200 {offsets = [0, 0], sizes = [1, 384], strides = [1, 1]} : vector<1x512xf32> to vector<1x384xf32>
    %202 = arith.negf %201 : vector<1x384xf32>
    %203 = math.exp %202 : vector<1x384xf32>
    %cst_34 = arith.constant 1.000000e+00 : f32
    %204 = vector.broadcast %cst_34 : f32 to vector<1x384xf32>
    %205 = arith.addf %204, %203 : vector<1x384xf32>
    %206 = arith.divf %204, %205 : vector<1x384xf32>
    %207 = vector.extract_strided_slice %206 {offsets = [0, 0], sizes = [1, 128], strides = [1, 1]} : vector<1x384xf32> to vector<1x128xf32>
    %208 = vector.extract_strided_slice %206 {offsets = [0, 128], sizes = [1, 128], strides = [1, 1]} : vector<1x384xf32> to vector<1x128xf32>
    %209 = vector.extract_strided_slice %206 {offsets = [0, 256], sizes = [1, 128], strides = [1, 1]} : vector<1x384xf32> to vector<1x128xf32>
    %210 = vector.extract_strided_slice %200 {offsets = [0, 384], sizes = [1, 128], strides = [1, 1]} : vector<1x512xf32> to vector<1x128xf32>
    %211 = math.tanh %210 : vector<1x128xf32>
    %212 = arith.mulf %208, %192 : vector<1x128xf32>
    %213 = arith.mulf %207, %211 : vector<1x128xf32>
    %214 = arith.addf %212, %213 : vector<1x128xf32>
    %215 = math.tanh %214 : vector<1x128xf32>
    %216 = arith.mulf %209, %215 : vector<1x128xf32>
    %217 = arith.truncf %216 : vector<1x128xf32> to vector<1x128xbf16>
    %cst_35 = arith.constant dense<0.000000e+00> : vector<1x512xf32>
    %218 = tpu.matmul %217, %197, %cst_35 {dimension_numbers = #tpu.dot_dimension_numbers<[1], [0], [0], [1], [0, 0, 1, 1], [], []>} : vector<1x128xbf16>, vector<128x512xbf16>, vector<1x512xf32> -> vector<1x512xf32>
    %219 = arith.addf %177, %218 : vector<1x512xf32>
    %220 = vector.extract_strided_slice %219 {offsets = [0, 0], sizes = [1, 384], strides = [1, 1]} : vector<1x512xf32> to vector<1x384xf32>
    %221 = arith.negf %220 : vector<1x384xf32>
    %222 = math.exp %221 : vector<1x384xf32>
    %cst_36 = arith.constant 1.000000e+00 : f32
    %223 = vector.broadcast %cst_36 : f32 to vector<1x384xf32>
    %224 = arith.addf %223, %222 : vector<1x384xf32>
    %225 = arith.divf %223, %224 : vector<1x384xf32>
    %226 = vector.extract_strided_slice %225 {offsets = [0, 0], sizes = [1, 128], strides = [1, 1]} : vector<1x384xf32> to vector<1x128xf32>
    %227 = vector.extract_strided_slice %225 {offsets = [0, 128], sizes = [1, 128], strides = [1, 1]} : vector<1x384xf32> to vector<1x128xf32>
    %228 = vector.extract_strided_slice %225 {offsets = [0, 256], sizes = [1, 128], strides = [1, 1]} : vector<1x384xf32> to vector<1x128xf32>
    %229 = vector.extract_strided_slice %219 {offsets = [0, 384], sizes = [1, 128], strides = [1, 1]} : vector<1x512xf32> to vector<1x128xf32>
    %230 = math.tanh %229 : vector<1x128xf32>
    %231 = arith.mulf %227, %214 : vector<1x128xf32>
    %232 = arith.mulf %226, %230 : vector<1x128xf32>
    %233 = arith.addf %231, %232 : vector<1x128xf32>
    %234 = math.tanh %233 : vector<1x128xf32>
    %235 = arith.mulf %228, %234 : vector<1x128xf32>
    %236 = arith.truncf %235 : vector<1x128xf32> to vector<1x128xbf16>
    %cst_37 = arith.constant dense<0.000000e+00> : vector<1x512xf32>
    %237 = tpu.matmul %236, %197, %cst_37 {dimension_numbers = #tpu.dot_dimension_numbers<[1], [0], [0], [1], [0, 0, 1, 1], [], []>} : vector<1x128xbf16>, vector<128x512xbf16>, vector<1x512xf32> -> vector<1x512xf32>
    %238 = arith.addf %177, %237 : vector<1x512xf32>
    %239 = vector.extract_strided_slice %238 {offsets = [0, 0], sizes = [1, 384], strides = [1, 1]} : vector<1x512xf32> to vector<1x384xf32>
    %240 = arith.negf %239 : vector<1x384xf32>
    %241 = math.exp %240 : vector<1x384xf32>
    %cst_38 = arith.constant 1.000000e+00 : f32
    %242 = vector.broadcast %cst_38 : f32 to vector<1x384xf32>
    %243 = arith.addf %242, %241 : vector<1x384xf32>
    %244 = arith.divf %242, %243 : vector<1x384xf32>
    %245 = vector.extract_strided_slice %244 {offsets = [0, 0], sizes = [1, 128], strides = [1, 1]} : vector<1x384xf32> to vector<1x128xf32>
    %246 = vector.extract_strided_slice %244 {offsets = [0, 128], sizes = [1, 128], strides = [1, 1]} : vector<1x384xf32> to vector<1x128xf32>
    %247 = vector.extract_strided_slice %244 {offsets = [0, 256], sizes = [1, 128], strides = [1, 1]} : vector<1x384xf32> to vector<1x128xf32>
    %248 = vector.extract_strided_slice %238 {offsets = [0, 384], sizes = [1, 128], strides = [1, 1]} : vector<1x512xf32> to vector<1x128xf32>
    %249 = math.tanh %248 : vector<1x128xf32>
    %250 = arith.mulf %246, %233 : vector<1x128xf32>
    %251 = arith.mulf %245, %249 : vector<1x128xf32>
    %252 = arith.addf %250, %251 : vector<1x128xf32>
    %253 = math.tanh %252 : vector<1x128xf32>
    %254 = arith.mulf %247, %253 : vector<1x128xf32>
    %255 = arith.truncf %254 : vector<1x128xf32> to vector<1x128xbf16>
    %cst_39 = arith.constant dense<0.000000e+00> : vector<1x512xf32>
    %256 = tpu.matmul %255, %197, %cst_39 {dimension_numbers = #tpu.dot_dimension_numbers<[1], [0], [0], [1], [0, 0, 1, 1], [], []>} : vector<1x128xbf16>, vector<128x512xbf16>, vector<1x512xf32> -> vector<1x512xf32>
    %257 = arith.addf %177, %256 : vector<1x512xf32>
    %258 = vector.extract_strided_slice %257 {offsets = [0, 0], sizes = [1, 384], strides = [1, 1]} : vector<1x512xf32> to vector<1x384xf32>
    %259 = arith.negf %258 : vector<1x384xf32>
    %260 = math.exp %259 : vector<1x384xf32>
    %cst_40 = arith.constant 1.000000e+00 : f32
    %261 = vector.broadcast %cst_40 : f32 to vector<1x384xf32>
    %262 = arith.addf %261, %260 : vector<1x384xf32>
    %263 = arith.divf %261, %262 : vector<1x384xf32>
    %264 = vector.extract_strided_slice %263 {offsets = [0, 0], sizes = [1, 128], strides = [1, 1]} : vector<1x384xf32> to vector<1x128xf32>
    %265 = vector.extract_strided_slice %263 {offsets = [0, 128], sizes = [1, 128], strides = [1, 1]} : vector<1x384xf32> to vector<1x128xf32>
    %266 = vector.extract_strided_slice %263 {offsets = [0, 256], sizes = [1, 128], strides = [1, 1]} : vector<1x384xf32> to vector<1x128xf32>
    %267 = vector.extract_strided_slice %257 {offsets = [0, 384], sizes = [1, 128], strides = [1, 1]} : vector<1x512xf32> to vector<1x128xf32>
    %268 = math.tanh %267 : vector<1x128xf32>
    %269 = arith.mulf %265, %252 : vector<1x128xf32>
    %270 = arith.mulf %264, %268 : vector<1x128xf32>
    %271 = arith.addf %269, %270 : vector<1x128xf32>
    %272 = math.tanh %271 : vector<1x128xf32>
    %273 = arith.mulf %266, %272 : vector<1x128xf32>
    %274 = arith.truncf %273 : vector<1x128xf32> to vector<1x128xbf16>
    %cst_41 = arith.constant dense<0.000000e+00> : vector<1x512xf32>
    %275 = tpu.matmul %274, %197, %cst_41 {dimension_numbers = #tpu.dot_dimension_numbers<[1], [0], [0], [1], [0, 0, 1, 1], [], []>} : vector<1x128xbf16>, vector<128x512xbf16>, vector<1x512xf32> -> vector<1x512xf32>
    %276 = arith.addf %177, %275 : vector<1x512xf32>
    %277 = vector.extract_strided_slice %276 {offsets = [0, 0], sizes = [1, 384], strides = [1, 1]} : vector<1x512xf32> to vector<1x384xf32>
    %278 = arith.negf %277 : vector<1x384xf32>
    %279 = math.exp %278 : vector<1x384xf32>
    %cst_42 = arith.constant 1.000000e+00 : f32
    %280 = vector.broadcast %cst_42 : f32 to vector<1x384xf32>
    %281 = arith.addf %280, %279 : vector<1x384xf32>
    %282 = arith.divf %280, %281 : vector<1x384xf32>
    %283 = vector.extract_strided_slice %282 {offsets = [0, 0], sizes = [1, 128], strides = [1, 1]} : vector<1x384xf32> to vector<1x128xf32>
    %284 = vector.extract_strided_slice %282 {offsets = [0, 128], sizes = [1, 128], strides = [1, 1]} : vector<1x384xf32> to vector<1x128xf32>
    %285 = vector.extract_strided_slice %282 {offsets = [0, 256], sizes = [1, 128], strides = [1, 1]} : vector<1x384xf32> to vector<1x128xf32>
    %286 = vector.extract_strided_slice %276 {offsets = [0, 384], sizes = [1, 128], strides = [1, 1]} : vector<1x512xf32> to vector<1x128xf32>
    %287 = math.tanh %286 : vector<1x128xf32>
    %288 = arith.mulf %284, %271 : vector<1x128xf32>
    %289 = arith.mulf %283, %287 : vector<1x128xf32>
    %290 = arith.addf %288, %289 : vector<1x128xf32>
    %291 = math.tanh %290 : vector<1x128xf32>
    %292 = arith.mulf %285, %291 : vector<1x128xf32>
    %293 = arith.truncf %292 : vector<1x128xf32> to vector<1x128xbf16>
    %cst_43 = arith.constant dense<0.000000e+00> : vector<1x512xf32>
    %294 = tpu.matmul %293, %197, %cst_43 {dimension_numbers = #tpu.dot_dimension_numbers<[1], [0], [0], [1], [0, 0, 1, 1], [], []>} : vector<1x128xbf16>, vector<128x512xbf16>, vector<1x512xf32> -> vector<1x512xf32>
    %295 = arith.addf %177, %294 : vector<1x512xf32>
    %296 = vector.extract_strided_slice %295 {offsets = [0, 0], sizes = [1, 384], strides = [1, 1]} : vector<1x512xf32> to vector<1x384xf32>
    %297 = arith.negf %296 : vector<1x384xf32>
    %298 = math.exp %297 : vector<1x384xf32>
    %cst_44 = arith.constant 1.000000e+00 : f32
    %299 = vector.broadcast %cst_44 : f32 to vector<1x384xf32>
    %300 = arith.addf %299, %298 : vector<1x384xf32>
    %301 = arith.divf %299, %300 : vector<1x384xf32>
    %302 = vector.extract_strided_slice %301 {offsets = [0, 0], sizes = [1, 128], strides = [1, 1]} : vector<1x384xf32> to vector<1x128xf32>
    %303 = vector.extract_strided_slice %301 {offsets = [0, 128], sizes = [1, 128], strides = [1, 1]} : vector<1x384xf32> to vector<1x128xf32>
    %304 = vector.extract_strided_slice %301 {offsets = [0, 256], sizes = [1, 128], strides = [1, 1]} : vector<1x384xf32> to vector<1x128xf32>
    %305 = vector.extract_strided_slice %295 {offsets = [0, 384], sizes = [1, 128], strides = [1, 1]} : vector<1x512xf32> to vector<1x128xf32>
    %306 = math.tanh %305 : vector<1x128xf32>
    %307 = arith.mulf %303, %290 : vector<1x128xf32>
    %308 = arith.mulf %302, %306 : vector<1x128xf32>
    %309 = arith.addf %307, %308 : vector<1x128xf32>
    %310 = math.tanh %309 : vector<1x128xf32>
    %311 = arith.mulf %304, %310 : vector<1x128xf32>
    %312 = arith.truncf %311 : vector<1x128xf32> to vector<1x128xbf16>
    %cst_45 = arith.constant dense<0.000000e+00> : vector<1x512xf32>
    %313 = tpu.matmul %312, %197, %cst_45 {dimension_numbers = #tpu.dot_dimension_numbers<[1], [0], [0], [1], [0, 0, 1, 1], [], []>} : vector<1x128xbf16>, vector<128x512xbf16>, vector<1x512xf32> -> vector<1x512xf32>
    %314 = arith.addf %177, %313 : vector<1x512xf32>
    %315 = vector.extract_strided_slice %314 {offsets = [0, 0], sizes = [1, 384], strides = [1, 1]} : vector<1x512xf32> to vector<1x384xf32>
    %316 = arith.negf %315 : vector<1x384xf32>
    %317 = math.exp %316 : vector<1x384xf32>
    %cst_46 = arith.constant 1.000000e+00 : f32
    %318 = vector.broadcast %cst_46 : f32 to vector<1x384xf32>
    %319 = arith.addf %318, %317 : vector<1x384xf32>
    %320 = arith.divf %318, %319 : vector<1x384xf32>
    %321 = vector.extract_strided_slice %320 {offsets = [0, 0], sizes = [1, 128], strides = [1, 1]} : vector<1x384xf32> to vector<1x128xf32>
    %322 = vector.extract_strided_slice %320 {offsets = [0, 128], sizes = [1, 128], strides = [1, 1]} : vector<1x384xf32> to vector<1x128xf32>
    %323 = vector.extract_strided_slice %320 {offsets = [0, 256], sizes = [1, 128], strides = [1, 1]} : vector<1x384xf32> to vector<1x128xf32>
    %324 = vector.extract_strided_slice %314 {offsets = [0, 384], sizes = [1, 128], strides = [1, 1]} : vector<1x512xf32> to vector<1x128xf32>
    %325 = math.tanh %324 : vector<1x128xf32>
    %326 = arith.mulf %322, %309 : vector<1x128xf32>
    %327 = arith.mulf %321, %325 : vector<1x128xf32>
    %328 = arith.addf %326, %327 : vector<1x128xf32>
    %329 = math.tanh %328 : vector<1x128xf32>
    %330 = arith.mulf %323, %329 : vector<1x128xf32>
    %331 = tpu.concatenate %194, %216, %235, %254, %273, %292, %311, %330 in 0 : vector<1x128xf32>, vector<1x128xf32>, vector<1x128xf32>, vector<1x128xf32>, vector<1x128xf32>, vector<1x128xf32>, vector<1x128xf32>, vector<1x128xf32> -> vector<8x128xf32>
    %c0_47 = arith.constant 0 : index
    %c0_48 = arith.constant 0 : index
    %332 = vector.load %arg7[%c0_47, %c0_48] : memref<1x128xf32, #tpu.memory_space<vmem>>, vector<1x128xf32>
    %333 = vector.broadcast %332 : vector<1x128xf32> to vector<8x128xf32>
    %334 = arith.mulf %331, %333 : vector<8x128xf32>
    %cst_49 = arith.constant dense<0.000000e+00> : vector<8xf32>
    %335 = vector.multi_reduction <add>, %334, %cst_49 [1] : vector<8x128xf32> to vector<8xf32>
    %336 = vector.shape_cast %335 : vector<8xf32> to vector<8x1xf32>
    %c0_50 = arith.constant 0 : index
    %c0_51 = arith.constant 0 : index
    %337 = vector.load %arg8[%c0_50, %c0_51] : memref<1x1xf32, #tpu.memory_space<vmem>>, vector<1x1xf32>
    %338 = vector.broadcast %337 : vector<1x1xf32> to vector<8x1xf32>
    %339 = arith.addf %336, %338 : vector<8x1xf32>
    %c0_52 = arith.constant 0 : index
    %c0_53 = arith.constant 0 : index
    %340 = vector.load %arg9[%c0_52, %c0_53] : memref<8x1xf32, #tpu.memory_space<vmem>>, vector<8x1xf32>
    tpu.vector_store %arg9[%c0_52, %c0_53], %339 {strides = array<i32>} : memref<8x1xf32, #tpu.memory_space<vmem>>, vector<8x1xf32>,
    return
  }
}

</mosaic_0001>

<llo_original>
// kernel: tpu_custom_call.1
$region0: #{tpu_custom_call.1}
  #allocation0 [shape = 'u32[]', space=smem, size = 0x4, offset = 0x4, fixed_abs, tag = 'smem constant byte address 0x4 - core index']
  #allocation1 [shape = 'u32[144,128]{1,0:T(1,128)}', space=vmem, size = 0x12000, scoped, tag = 'internal scratch']
  #allocation2 [shape = 'bf16[128,512]{1,0:T(8,128)(2,1)}', space=vmem, size = 0x20000, scoped, tag = 'scratch operand']
  #allocation3 [shape = 'bf16[128,512]{1,0:T(8,128)(2,1)}', space=vmem, size = 0x20000, scoped, tag = 'scratch operand']
  #allocation4 [shape = 's32[2]{0}', space=sflag, size = 0x8, scoped, tag = 'scratch operand']
  #allocation5 [shape = 'f32[1,1]{1,0:T(1,128)S(1)}', space=vmem, size = 0x200, scoped, tag = 'scoped memory for tpu_custom_call.1']
  #allocation8 [shape = 's32[]', space=sflag, size = 0x4, offset = 0, fixed_abs, tag = 'sflag constant byte address 0x0 - dummy sync flag']
  #allocation9 [shape = 's32[]', space=sflag, size = 0x4, offset = 0, fixed_abs, tag = 'sflag constant byte address 0x0 - dummy sync flag']
  #allocation10 [shape = 'u32[]', space=smem, size = 0x4, offset = 0x44, fixed_abs, tag = 'smem constant byte address 0x44 - assertion arg 0']
  #allocation11 [shape = 'u32[]', space=smem, size = 0x4, offset = 0x48, fixed_abs, tag = 'smem constant byte address 0x48 - assertion arg 1']
  #allocation12 [shape = 's32[]', space=sflag, size = 0x4, offset = 0, fixed_abs, tag = 'sflag constant byte address 0x0 - dummy sync flag']
  #allocation13 [shape = 's32[]', space=sflag, size = 0x4, offset = 0, fixed_abs, tag = 'sflag constant byte address 0x0 - dummy sync flag']
  %s0 = inlined_call_operand.vmem [shape: f32[8,1], index: 0, kind: input, shape index: {}]
  %s1 = inlined_call_operand.vmem [shape: f32[1,512], index: 1, kind: input, shape index: {}]
  %s2 = inlined_call_operand.hbm [shape: bf16[128,512], index: 2, kind: input, shape index: {}]
  %s3 = inlined_call_operand.vmem [shape: f32[1,512], index: 3, kind: input, shape index: {}]
  %s4 = inlined_call_operand.hbm [shape: bf16[128,512], index: 4, kind: input, shape index: {}]
  %s5 = inlined_call_operand.hbm [shape: bf16[128,512], index: 5, kind: input, shape index: {}]
  %s6 = inlined_call_operand.vmem [shape: f32[1,512], index: 6, kind: input, shape index: {}]
  %s7 = inlined_call_operand.vmem [shape: f32[1,128], index: 7, kind: input, shape index: {}]
  %s8 = inlined_call_operand.<no memory space> [shape: f32[1,1], index: 8, kind: input, shape index: {}]
  %s9 = inlined_call_operand.vmem [shape: f32[8,1], index: 9, kind: output, shape index: {}]
  %s10 = sld [smem:[#allocation0]]
  $region50: #{tpu_custom_call.1} parent=0
    _
  %s12 = ssub.s32 1, %s10
  %s13 = scalar_select 0, %s12, %s10
  %v14 = vstv %s8
  %15 = vst [vmem:[#allocation5] sm:$0x1] %v14
  $region1: #{tpu_custom_call.1} parent=0
    #allocation6 [shape = 'u8[131072]{0}', space=vmem, size = 0x20000, scoped, tag = 'input window, operand 2, single buffered']
    #allocation7 [shape = 's32[1]{0}', space=sflag, size = 0x4, scoped, tag = 'scoped memory for tpu_custom_call.1']
    %16 = vsyncpa [#allocation7], 0
    // Predicated region
    $region2: #{tpu_custom_call.1} parent=1 // pred_check
      _
    $region3: #{tpu_custom_call.1} parent=1 // pred_check_branch
      %18 = sbr.rel (0) target = $region5
    $region4: #{tpu_custom_call.1} parent=1 // pred_region
      _
    $region5: #{tpu_custom_call.1} parent=1 // pred_fallthru
      _
    // Predicated region
    $region6: #{tpu_custom_call.1} parent=1 // pred_check
      _
    $region7: #{tpu_custom_call.1} parent=1 // pred_check_branch
      %20 = sbr.rel (0) target = $region9
    $region8: #{tpu_custom_call.1} parent=1 // pred_region
      _
    $region9: #{tpu_custom_call.1} parent=1 // pred_fallthru
      _
    // Predicated region
    $region10: #{tpu_custom_call.1} parent=1 // pred_check
      _
    $region11: #{tpu_custom_call.1} parent=1 // pred_check_branch
      %22 = sbr.rel (0) target = $region13
    $region12: #{tpu_custom_call.1} parent=1 // pred_region
      %s24 = ssub.s32 4096, 4096
      %25 = vsyncadd [#allocation7], %s24
      %s26 = sshll.u32 [#allocation6], 4
      %s27 = int_to_ptr.vmem [resolvable:$true] %s26
      %32 = dma.hbm_to_vmem [thread:$0]  %s2, 4096, %s27, [#allocation7], 256, 256, 16
    $region13: #{tpu_custom_call.1} parent=1 // pred_fallthru
      _
    // Predicated region
    $region14: #{tpu_custom_call.1} parent=1 // pred_check
      _
    $region15: #{tpu_custom_call.1} parent=1 // pred_check_branch
      %34 = sbr.rel (0) target = $region17
    $region16: #{tpu_custom_call.1} parent=1 // pred_region
      _
    $region17: #{tpu_custom_call.1} parent=1 // pred_fallthru
      _
    // Predicated region
    $region18: #{tpu_custom_call.1} parent=1 // pred_check
      _
    $region19: #{tpu_custom_call.1} parent=1 // pred_check_branch
      %36 = sbr.rel (0) target = $region21
    $region20: #{tpu_custom_call.1} parent=1 // pred_region
      _
    $region21: #{tpu_custom_call.1} parent=1 // pred_fallthru
      _
    // Predicated region
    $region22: #{tpu_custom_call.1} parent=1 // pred_check
      _
    $region23: #{tpu_custom_call.1} parent=1 // pred_check_branch
      %38 = sbr.rel (0) target = $region25
    $region24: #{tpu_custom_call.1} parent=1 // pred_region
      _
    $region25: #{tpu_custom_call.1} parent=1 // pred_fallthru
      _
    // Predicated region
    $region26: #{tpu_custom_call.1} parent=1 // pred_check
      _
    $region27: #{tpu_custom_call.1} parent=1 // pred_check_branch
      %40 = sbr.rel (0) target = $region29
    $region28: #{tpu_custom_call.1} parent=1 // pred_region
      _
    $region29: #{tpu_custom_call.1} parent=1 // pred_fallthru
      _
    // Predicated region
    $region30: #{tpu_custom_call.1} parent=1 // pred_check
      _
    $region31: #{tpu_custom_call.1} parent=1 // pred_check_branch
      %42 = sbr.rel (0) target = $region33
    $region32: #{tpu_custom_call.1} parent=1 // pred_region
      %43 = dma.done [#allocation7], 4096
    $region33: #{tpu_custom_call.1} parent=1 // pred_fallthru
      _
    // Predicated region
    $region34: #{tpu_custom_call.1} parent=1 // pred_check
      _
    $region35: #{tpu_custom_call.1} parent=1 // pred_check_branch
      %46 = sbr.rel target = $region37
    $region36: #{tpu_custom_call.1} parent=1 // pred_region
      %47 = sst [smem:[#allocation10]] [#allocation9]
      %48 = sst [smem:[#allocation11]] [#allocation8]
    $region37: #{tpu_custom_call.1} parent=1 // pred_fallthru
      _
    %50 = shalt.err (0)
    %s52 = sshll.u32 [#allocation2], 4
    %s53 = int_to_ptr.vmem [resolvable:$true] %s52
    %55 = dma.hbm_to_vmem [thread:$0]  %s4, 4096, %s53, [#allocation4]
    %s56 = scalar_lea.sflag [#allocation4], 1
    // Predicated region
    $region38: #{tpu_custom_call.1} parent=1 // pred_check
      _
    $region39: #{tpu_custom_call.1} parent=1 // pred_check_branch
      %58 = sbr.rel target = $region41
    $region40: #{tpu_custom_call.1} parent=1 // pred_region
      %59 = sst [smem:[#allocation10]] [#allocation13]
      %60 = sst [smem:[#allocation11]] [#allocation12]
    $region41: #{tpu_custom_call.1} parent=1 // pred_fallthru
      _
    %62 = shalt.err (0)
    %s64 = sshll.u32 [#allocation3], 4
    %s65 = int_to_ptr.vmem [resolvable:$true] %s64
    %67 = dma.hbm_to_vmem [thread:$0]  %s5, 4096, %s65, %s56
    %v68 = vld [vmem:[%s0] sm:$0xff]
    %v69 = vld [vmem:[%s1] sm:$0xf]
    %71 = vset.pattern.permute.xlu0 0
    %72 = vperm.xlu0 %71, %v68
    %v73 = vpop.permute.xlu0 %72
    %v76 = vlaneseq
    %v77 = vshrl.u32 %v76, 7
    %v78 = vsub.s32 0, %v77
    %v79 = vrot.slane %v69, %v78
    %v80 = vlaneseq
    %v81 = vshrl.u32 %v80, 7
    %v82 = vsub.s32 1, %v81
    %v83 = vrot.slane %v69, %v82
    %v84 = vlaneseq
    %v85 = vshrl.u32 %v84, 7
    %v86 = vsub.s32 2, %v85
    %v87 = vrot.slane %v69, %v86
    %v88 = vlaneseq
    %v89 = vshrl.u32 %v88, 7
    %v90 = vsub.s32 3, %v89
    %v91 = vrot.slane %v69, %v90
    %v96 = vmul.f32 %v73, %v79
    %v97 = vmul.f32 %v73, %v83
    %v98 = vmul.f32 %v73, %v87
    %v99 = vmul.f32 %v73, %v91
    %v100 = vld [vmem:[%s3] sm:$0xf]
    %v102 = vlaneseq
    %v103 = vshrl.u32 %v102, 7
    %v104 = vsub.s32 0, %v103
    %v105 = vrot.slane %v100, %v104
    %v106 = vlaneseq
    %v107 = vshrl.u32 %v106, 7
    %v108 = vsub.s32 1, %v107
    %v109 = vrot.slane %v100, %v108
    %v110 = vlaneseq
    %v111 = vshrl.u32 %v110, 7
    %v112 = vsub.s32 2, %v111
    %v113 = vrot.slane %v100, %v112
    %v114 = vlaneseq
    %v115 = vshrl.u32 %v114, 7
    %v116 = vsub.s32 3, %v115
    %v117 = vrot.slane %v100, %v116
    %v122 = vadd.f32 %v96, %v105
    %v123 = vadd.f32 %v97, %v109
    %v124 = vadd.f32 %v98, %v113
    %v125 = vadd.f32 %v99, %v117
    %v126 = vld [vmem:[#allocation6] sm:$0xff]
    %v127 = vld [vmem:[#allocation6 + $0x8] sm:$0xff]
    %v128 = vld [vmem:[#allocation6 + $0x10] sm:$0xff]
    %v129 = vld [vmem:[#allocation6 + $0x18] sm:$0xff]
    %v130 = vld [vmem:[#allocation6 + $0x20] sm:$0xff]
    %v131 = vld [vmem:[#allocation6 + $0x28] sm:$0xff]
    %v132 = vld [vmem:[#allocation6 + $0x30] sm:$0xff]
    %v133 = vld [vmem:[#allocation6 + $0x38] sm:$0xff]
    %v134 = vld [vmem:[#allocation6 + $0x40] sm:$0xff]
    %v135 = vld [vmem:[#allocation6 + $0x48] sm:$0xff]
    %v136 = vld [vmem:[#allocation6 + $0x50] sm:$0xff]
    %v137 = vld [vmem:[#allocation6 + $0x58] sm:$0xff]
    %v138 = vld [vmem:[#allocation6 + $0x60] sm:$0xff]
    %v139 = vld [vmem:[#allocation6 + $0x68] sm:$0xff]
    %v140 = vld [vmem:[#allocation6 + $0x70] sm:$0xff]
    %v141 = vld [vmem:[#allocation6 + $0x78] sm:$0xff]
    %v142 = vld [vmem:[#allocation6 + $0x80] sm:$0xff]
    %v143 = vld [vmem:[#allocation6 + $0x88] sm:$0xff]
    %v144 = vld [vmem:[#allocation6 + $0x90] sm:$0xff]
    %v145 = vld [vmem:[#allocation6 + $0x98] sm:$0xff]
    %v146 = vld [vmem:[#allocation6 + $0xa0] sm:$0xff]
    %v147 = vld [vmem:[#allocation6 + $0xa8] sm:$0xff]
    %v148 = vld [vmem:[#allocation6 + $0xb0] sm:$0xff]
    %v149 = vld [vmem:[#allocation6 + $0xb8] sm:$0xff]
    %v150 = vld [vmem:[#allocation6 + $0xc0] sm:$0xff]
    %v151 = vld [vmem:[#allocation6 + $0xc8] sm:$0xff]
    %v152 = vld [vmem:[#allocation6 + $0xd0] sm:$0xff]
    %v153 = vld [vmem:[#allocation6 + $0xd8] sm:$0xff]
    %v154 = vld [vmem:[#allocation6 + $0xe0] sm:$0xff]
    %v155 = vld [vmem:[#allocation6 + $0xe8] sm:$0xff]
    %v156 = vld [vmem:[#allocation6 + $0xf0] sm:$0xff]
    %v157 = vld [vmem:[#allocation6 + $0xf8] sm:$0xff]
    %v158 = vxor.u32 %v122, 2147483648
    %v159 = vxor.u32 %v123, 2147483648
    %v160 = vxor.u32 %v124, 2147483648
    %v161 = vmul.f32 %v158, 1.442695
    %v162 = vpow.pop %v161
    %v163 = vmul.f32 %v159, 1.442695
    %v164 = vpow.pop %v163
    %v165 = vmul.f32 %v160, 1.442695
    %v166 = vpow.pop %v165
    %v167 = vadd.f32 %v162, 1.0
    %v168 = vadd.f32 %v164, 1.0
    %v169 = vadd.f32 %v166, 1.0
    %v170 = vrcp.pop %v167
    %v171 = vmul.f32 1.0, %v170
    %v172 = vrcp.pop %v168
    %v173 = vmul.f32 1.0, %v172
    %v174 = vrcp.pop %v169
    %v175 = vmul.f32 1.0, %v174
    %v176 = vtanh.pop %v125
    %v177 = vmul.f32 %v173, 0.0
    %v178 = vmul.f32 %v171, %v176
    %v179 = vadd.f32 %v177, %v178
    %v180 = vtanh.pop %v179
    %v181 = vmul.f32 %v175, %v180
    %v182 = vpack.c.bf16 %v181, %v181
    %v215 = vunpack.c.l.b16 %v126
    %v216 = vunpack.c.h.b16 %v126
    %v217 = vunpack.c.l.b16 %v127
    %v218 = vunpack.c.h.b16 %v127
    %v219 = vunpack.c.l.b16 %v128
    %v220 = vunpack.c.h.b16 %v128
    %v221 = vunpack.c.l.b16 %v129
    %v222 = vunpack.c.h.b16 %v129
    %v223 = vunpack.c.l.b16 %v130
    %v224 = vunpack.c.h.b16 %v130
    %v225 = vunpack.c.l.b16 %v131
    %v226 = vunpack.c.h.b16 %v131
    %v227 = vunpack.c.l.b16 %v132
    %v228 = vunpack.c.h.b16 %v132
    %v229 = vunpack.c.l.b16 %v133
    %v230 = vunpack.c.h.b16 %v133
    %v231 = vunpack.c.l.b16 %v134
    %v232 = vunpack.c.h.b16 %v134
    %v233 = vunpack.c.l.b16 %v135
    %v234 = vunpack.c.h.b16 %v135
    %v235 = vunpack.c.l.b16 %v136
    %v236 = vunpack.c.h.b16 %v136
    %v237 = vunpack.c.l.b16 %v137
    %v238 = vunpack.c.h.b16 %v137
    %v239 = vunpack.c.l.b16 %v138
    %v240 = vunpack.c.h.b16 %v138
    %v241 = vunpack.c.l.b16 %v139
    %v242 = vunpack.c.h.b16 %v139
    %v243 = vunpack.c.l.b16 %v140
    %v244 = vunpack.c.h.b16 %v140
    %v245 = vunpack.c.l.b16 %v141
    %v246 = vunpack.c.h.b16 %v141
    %v247 = vunpack.c.l.b16 %v142
    %v248 = vunpack.c.h.b16 %v142
    %v249 = vunpack.c.l.b16 %v143
    %v250 = vunpack.c.h.b16 %v143
    %v251 = vunpack.c.l.b16 %v144
    %v252 = vunpack.c.h.b16 %v144
    %v253 = vunpack.c.l.b16 %v145
    %v254 = vunpack.c.h.b16 %v145
    %v255 = vunpack.c.l.b16 %v146
    %v256 = vunpack.c.h.b16 %v146
    %v257 = vunpack.c.l.b16 %v147
    %v258 = vunpack.c.h.b16 %v147
    %v259 = vunpack.c.l.b16 %v148
    %v260 = vunpack.c.h.b16 %v148
    %v261 = vunpack.c.l.b16 %v149
    %v262 = vunpack.c.h.b16 %v149
    %v263 = vunpack.c.l.b16 %v150
    %v264 = vunpack.c.h.b16 %v150
    %v265 = vunpack.c.l.b16 %v151
    %v266 = vunpack.c.h.b16 %v151
    %v267 = vunpack.c.l.b16 %v152
    %v268 = vunpack.c.h.b16 %v152
    %v269 = vunpack.c.l.b16 %v153
    %v270 = vunpack.c.h.b16 %v153
    %v271 = vunpack.c.l.b16 %v154
    %v272 = vunpack.c.h.b16 %v154
    %v273 = vunpack.c.l.b16 %v155
    %v274 = vunpack.c.h.b16 %v155
    %v275 = vunpack.c.l.b16 %v156
    %v276 = vunpack.c.h.b16 %v156
    %v277 = vunpack.c.l.b16 %v157
    %v278 = vunpack.c.h.b16 %v157
    %v279 = vpack.c.b16 %v219, %v215
    %v280 = vpack.c.b16 %v220, %v216
    %v281 = vpack.c.b16 %v221, %v217
    %v282 = vpack.c.b16 %v222, %v218
    %v283 = vpack.c.b16 %v227, %v223
    %v284 = vpack.c.b16 %v228, %v224
    %v285 = vpack.c.b16 %v229, %v225
    %v286 = vpack.c.b16 %v230, %v226
    %v287 = vpack.c.b16 %v235, %v231
    %v288 = vpack.c.b16 %v236, %v232
    %v289 = vpack.c.b16 %v237, %v233
    %v290 = vpack.c.b16 %v238, %v234
    %v291 = vpack.c.b16 %v243, %v239
    %v292 = vpack.c.b16 %v244, %v240
    %v293 = vpack.c.b16 %v245, %v241
    %v294 = vpack.c.b16 %v246, %v242
    %v295 = vpack.c.b16 %v251, %v247
    %v296 = vpack.c.b16 %v252, %v248
    %v297 = vpack.c.b16 %v253, %v249
    %v298 = vpack.c.b16 %v254, %v250
    %v299 = vpack.c.b16 %v259, %v255
    %v300 = vpack.c.b16 %v260, %v256
    %v301 = vpack.c.b16 %v261, %v257
    %v302 = vpack.c.b16 %v262, %v258
    %v303 = vpack.c.b16 %v267, %v263
    %v304 = vpack.c.b16 %v268, %v264
    %v305 = vpack.c.b16 %v269, %v265
    %v306 = vpack.c.b16 %v270, %v266
    %v307 = vpack.c.b16 %v275, %v271
    %v308 = vpack.c.b16 %v276, %v272
    %v309 = vpack.c.b16 %v277, %v273
    %v310 = vpack.c.b16 %v278, %v274
    %343 = vmatprep.subr.bf16.mxu0 %v308
    %344 = vmatpush1.bf16.msra.mxu0 %v307
    %345 = vmatprep.subr.bf16.mxu0 %v304
    %346 = vmatpush1.bf16.msra.mxu0 %v303
    %347 = vmatprep.subr.bf16.mxu0 %v300
    %348 = vmatpush1.bf16.msra.mxu0 %v299
    %349 = vmatprep.subr.bf16.mxu0 %v296
    %350 = vmatpush1.bf16.msra.mxu0 %v295
    %351 = vmatprep.subr.bf16.mxu0 %v292
    %352 = vmatpush1.bf16.msra.mxu0 %v291
    %353 = vmatprep.subr.bf16.mxu0 %v288
    %354 = vmatpush1.bf16.msra.mxu0 %v287
    %355 = vmatprep.subr.bf16.mxu0 %v284
    %356 = vmatpush1.bf16.msra.mxu0 %v283
    %357 = vmatprep.subr.bf16.mxu0 %v280
    %358 = vmatpush1.bf16.msra.mxu0 %v279
    %359 = vmatprep.subr.bf16.mxu0 0
    %360 = vmatpush2.bf16.msra.mxu0 0
    %361 = vmatprep.subr.bf16.mxu0 0
    %362 = vmatpush2.bf16.msra.mxu0 0
    %363 = vmatprep.subr.bf16.mxu0 0
    %364 = vmatpush2.bf16.msra.mxu0 0
    %365 = vmatprep.subr.bf16.mxu0 0
    %366 = vmatpush2.bf16.msra.mxu0 0
    %367 = vmatprep.subr.bf16.mxu0 0
    %368 = vmatpush2.bf16.msra.mxu0 0
    %369 = vmatprep.subr.bf16.mxu0 0
    %370 = vmatpush2.bf16.msra.mxu0 0
    %371 = vmatprep.subr.bf16.mxu0 0
    %372 = vmatpush2.bf16.msra.mxu0 0
    %373 = vmatprep.subr.bf16.mxu0 0
    %374 = vmatpush2.bf16.msra.mxu0 0
    %375 = vmatprep.mubr.bf16.mxu0 0
    %376 = vmatmul.mubr.bf16.gmra.mxu0 %v182
    %v377 = vpop.f32.mrf.mxu0
    %v378 = vadd.f32 0.0, %v377
    %v379 = vpop.f32.mrf.mxu0
    %v380 = vadd.f32 0.0, %v379
    %v381 = vpop.f32.mrf.mxu0
    %v382 = vpop.f32.mrf.mxu0
    %383 = vdwg.mxu0
    %384 = vmatprep.subr.bf16.mxu0 %v310
    %385 = vmatpush1.bf16.msra.mxu0 %v309
    %386 = vmatprep.subr.bf16.mxu0 %v306
    %387 = vmatpush1.bf16.msra.mxu0 %v305
    %388 = vmatprep.subr.bf16.mxu0 %v302
    %389 = vmatpush1.bf16.msra.mxu0 %v301
    %390 = vmatprep.subr.bf16.mxu0 %v298
    %391 = vmatpush1.bf16.msra.mxu0 %v297
    %392 = vmatprep.subr.bf16.mxu0 %v294
    %393 = vmatpush1.bf16.msra.mxu0 %v293
    %394 = vmatprep.subr.bf16.mxu0 %v290
    %395 = vmatpush1.bf16.msra.mxu0 %v289
    %396 = vmatprep.subr.bf16.mxu0 %v286
    %397 = vmatpush1.bf16.msra.mxu0 %v285
    %398 = vmatprep.subr.bf16.mxu0 %v282
    %399 = vmatpush1.bf16.msra.mxu0 %v281
    %400 = vmatprep.subr.bf16.mxu0 0
    %401 = vmatpush2.bf16.msra.mxu0 0
    %402 = vmatprep.subr.bf16.mxu0 0
    %403 = vmatpush2.bf16.msra.mxu0 0
    %404 = vmatprep.subr.bf16.mxu0 0
    %405 = vmatpush2.bf16.msra.mxu0 0
    %406 = vmatprep.subr.bf16.mxu0 0
    %407 = vmatpush2.bf16.msra.mxu0 0
    %408 = vmatprep.subr.bf16.mxu0 0
    %409 = vmatpush2.bf16.msra.mxu0 0
    %410 = vmatprep.subr.bf16.mxu0 0
    %411 = vmatpush2.bf16.msra.mxu0 0
    %412 = vmatprep.subr.bf16.mxu0 0
    %413 = vmatpush2.bf16.msra.mxu0 0
    %414 = vmatprep.subr.bf16.mxu0 0
    %415 = vmatpush2.bf16.msra.mxu0 0
    %416 = vmatprep.mubr.bf16.mxu0 0
    %417 = vmatmul.mubr.bf16.gmra.mxu0 %v182
    %v418 = vpop.f32.mrf.mxu0
    %v419 = vadd.f32 0.0, %v418
    %v420 = vpop.f32.mrf.mxu0
    %v421 = vadd.f32 0.0, %v420
    %v422 = vpop.f32.mrf.mxu0
    %v423 = vpop.f32.mrf.mxu0
    %424 = vdwg.mxu0
    %v429 = vrot.slane %v378, 7
    %v430 = vrot.slane %v380, 7
    %v431 = vrot.slane %v419, 7
    %v432 = vrot.slane %v421, 7
    %v437 = vadd.f32 %v122, %v429
    %v438 = vadd.f32 %v123, %v430
    %v439 = vadd.f32 %v124, %v431
    %v440 = vadd.f32 %v125, %v432
    %v441 = vxor.u32 %v437, 2147483648
    %v442 = vxor.u32 %v438, 2147483648
    %v443 = vxor.u32 %v439, 2147483648
    %v444 = vmul.f32 %v441, 1.442695
    %v445 = vpow.pop %v444
    %v446 = vmul.f32 %v442, 1.442695
    %v447 = vpow.pop %v446
    %v448 = vmul.f32 %v443, 1.442695
    %v449 = vpow.pop %v448
    %v450 = vadd.f32 %v445, 1.0
    %v451 = vadd.f32 %v447, 1.0
    %v452 = vadd.f32 %v449, 1.0
    %v453 = vrcp.pop %v450
    %v454 = vmul.f32 1.0, %v453
    %v455 = vrcp.pop %v451
    %v456 = vmul.f32 1.0, %v455
    %v457 = vrcp.pop %v452
    %v458 = vmul.f32 1.0, %v457
    %v459 = vtanh.pop %v440
    %v461 = vrot.slane %v179, 7
    %v463 = vmul.f32 %v456, %v461
    %v464 = vmul.f32 %v454, %v459
    %v465 = vadd.f32 %v463, %v464
    %v466 = vtanh.pop %v465
    %v467 = vmul.f32 %v458, %v466
    %v468 = vpack.c.bf16 %v467, %v467
    %v470 = vshrl.u32 %v468, 16
    %473 = vmatprep.subr.bf16.mxu0 %v308
    %474 = vmatpush1.bf16.msra.mxu0 %v307
    %475 = vmatprep.subr.bf16.mxu0 %v304
    %476 = vmatpush1.bf16.msra.mxu0 %v303
    %477 = vmatprep.subr.bf16.mxu0 %v300
    %478 = vmatpush1.bf16.msra.mxu0 %v299
    %479 = vmatprep.subr.bf16.mxu0 %v296
    %480 = vmatpush1.bf16.msra.mxu0 %v295
    %481 = vmatprep.subr.bf16.mxu0 %v292
    %482 = vmatpush1.bf16.msra.mxu0 %v291
    %483 = vmatprep.subr.bf16.mxu0 %v288
    %484 = vmatpush1.bf16.msra.mxu0 %v287
    %485 = vmatprep.subr.bf16.mxu0 %v284
    %486 = vmatpush1.bf16.msra.mxu0 %v283
    %487 = vmatprep.subr.bf16.mxu0 %v280
    %488 = vmatpush1.bf16.msra.mxu0 %v279
    %489 = vmatprep.subr.bf16.mxu0 0
    %490 = vmatpush2.bf16.msra.mxu0 0
    %491 = vmatprep.subr.bf16.mxu0 0
    %492 = vmatpush2.bf16.msra.mxu0 0
    %493 = vmatprep.subr.bf16.mxu0 0
    %494 = vmatpush2.bf16.msra.mxu0 0
    %495 = vmatprep.subr.bf16.mxu0 0
    %496 = vmatpush2.bf16.msra.mxu0 0
    %497 = vmatprep.subr.bf16.mxu0 0
    %498 = vmatpush2.bf16.msra.mxu0 0
    %499 = vmatprep.subr.bf16.mxu0 0
    %500 = vmatpush2.bf16.msra.mxu0 0
    %501 = vmatprep.subr.bf16.mxu0 0
    %502 = vmatpush2.bf16.msra.mxu0 0
    %503 = vmatprep.subr.bf16.mxu0 0
    %504 = vmatpush2.bf16.msra.mxu0 0
    %505 = vmatprep.mubr.bf16.mxu0 0
    %506 = vmatmul.mubr.bf16.gmra.mxu0 %v470
    %v507 = vpop.f32.mrf.mxu0
    %v508 = vadd.f32 0.0, %v507
    %v509 = vpop.f32.mrf.mxu0
    %v510 = vadd.f32 0.0, %v509
    %v511 = vpop.f32.mrf.mxu0
    %v512 = vpop.f32.mrf.mxu0
    %513 = vdwg.mxu0
    %514 = vmatprep.subr.bf16.mxu0 %v310
    %515 = vmatpush1.bf16.msra.mxu0 %v309
    %516 = vmatprep.subr.bf16.mxu0 %v306
    %517 = vmatpush1.bf16.msra.mxu0 %v305
    %518 = vmatprep.subr.bf16.mxu0 %v302
    %519 = vmatpush1.bf16.msra.mxu0 %v301
    %520 = vmatprep.subr.bf16.mxu0 %v298
    %521 = vmatpush1.bf16.msra.mxu0 %v297
    %522 = vmatprep.subr.bf16.mxu0 %v294
    %523 = vmatpush1.bf16.msra.mxu0 %v293
    %524 = vmatprep.subr.bf16.mxu0 %v290
    %525 = vmatpush1.bf16.msra.mxu0 %v289
    %526 = vmatprep.subr.bf16.mxu0 %v286
    %527 = vmatpush1.bf16.msra.mxu0 %v285
    %528 = vmatprep.subr.bf16.mxu0 %v282
    %529 = vmatpush1.bf16.msra.mxu0 %v281
    %530 = vmatprep.subr.bf16.mxu0 0
    %531 = vmatpush2.bf16.msra.mxu0 0
    %532 = vmatprep.subr.bf16.mxu0 0
    %533 = vmatpush2.bf16.msra.mxu0 0
    %534 = vmatprep.subr.bf16.mxu0 0
    %535 = vmatpush2.bf16.msra.mxu0 0
    %536 = vmatprep.subr.bf16.mxu0 0
    %537 = vmatpush2.bf16.msra.mxu0 0
    %538 = vmatprep.subr.bf16.mxu0 0
    %539 = vmatpush2.bf16.msra.mxu0 0
    %540 = vmatprep.subr.bf16.mxu0 0
    %541 = vmatpush2.bf16.msra.mxu0 0
    %542 = vmatprep.subr.bf16.mxu0 0
    %543 = vmatpush2.bf16.msra.mxu0 0
    %544 = vmatprep.subr.bf16.mxu0 0
    %545 = vmatpush2.bf16.msra.mxu0 0
    %546 = vmatprep.mubr.bf16.mxu0 0
    %547 = vmatmul.mubr.bf16.gmra.mxu0 %v470
    %v548 = vpop.f32.mrf.mxu0
    %v549 = vadd.f32 0.0, %v548
    %v550 = vpop.f32.mrf.mxu0
    %v551 = vadd.f32 0.0, %v550
    %v552 = vpop.f32.mrf.mxu0
    %v553 = vpop.f32.mrf.mxu0
    %554 = vdwg.mxu0
    %v559 = vrot.slane %v508, 6
    %v560 = vrot.slane %v510, 6
    %v561 = vrot.slane %v549, 6
    %v562 = vrot.slane %v551, 6
    %v567 = vadd.f32 %v122, %v559
    %v568 = vadd.f32 %v123, %v560
    %v569 = vadd.f32 %v124, %v561
    %v570 = vadd.f32 %v125, %v562
    %v571 = vxor.u32 %v567, 2147483648
    %v572 = vxor.u32 %v568, 2147483648
    %v573 = vxor.u32 %v569, 2147483648
    %v574 = vmul.f32 %v571, 1.442695
    %v575 = vpow.pop %v574
    %v576 = vmul.f32 %v572, 1.442695
    %v577 = vpow.pop %v576
    %v578 = vmul.f32 %v573, 1.442695
    %v579 = vpow.pop %v578
    %v580 = vadd.f32 %v575, 1.0
    %v581 = vadd.f32 %v577, 1.0
    %v582 = vadd.f32 %v579, 1.0
    %v583 = vrcp.pop %v580
    %v584 = vmul.f32 1.0, %v583
    %v585 = vrcp.pop %v581
    %v586 = vmul.f32 1.0, %v585
    %v587 = vrcp.pop %v582
    %v588 = vmul.f32 1.0, %v587
    %v589 = vtanh.pop %v570
    %v591 = vrot.slane %v465, 7
    %v593 = vmul.f32 %v586, %v591
    %v594 = vmul.f32 %v584, %v589
    %v595 = vadd.f32 %v593, %v594
    %v596 = vtanh.pop %v595
    %v597 = vmul.f32 %v588, %v596
    %v598 = vpack.c.bf16 %v597, %v597
    %v600 = vrot.slane %v598, 1
    %602 = vmatprep.subr.bf16.mxu0 %v308
    %603 = vmatpush1.bf16.msra.mxu0 %v307
    %604 = vmatprep.subr.bf16.mxu0 %v304
    %605 = vmatpush1.bf16.msra.mxu0 %v303
    %606 = vmatprep.subr.bf16.mxu0 %v300
    %607 = vmatpush1.bf16.msra.mxu0 %v299
    %608 = vmatprep.subr.bf16.mxu0 %v296
    %609 = vmatpush1.bf16.msra.mxu0 %v295
    %610 = vmatprep.subr.bf16.mxu0 %v292
    %611 = vmatpush1.bf16.msra.mxu0 %v291
    %612 = vmatprep.subr.bf16.mxu0 %v288
    %613 = vmatpush1.bf16.msra.mxu0 %v287
    %614 = vmatprep.subr.bf16.mxu0 %v284
    %615 = vmatpush1.bf16.msra.mxu0 %v283
    %616 = vmatprep.subr.bf16.mxu0 %v280
    %617 = vmatpush1.bf16.msra.mxu0 %v279
    %618 = vmatprep.subr.bf16.mxu0 0
    %619 = vmatpush2.bf16.msra.mxu0 0
    %620 = vmatprep.subr.bf16.mxu0 0
    %621 = vmatpush2.bf16.msra.mxu0 0
    %622 = vmatprep.subr.bf16.mxu0 0
    %623 = vmatpush2.bf16.msra.mxu0 0
    %624 = vmatprep.subr.bf16.mxu0 0
    %625 = vmatpush2.bf16.msra.mxu0 0
    %626 = vmatprep.subr.bf16.mxu0 0
    %627 = vmatpush2.bf16.msra.mxu0 0
    %628 = vmatprep.subr.bf16.mxu0 0
    %629 = vmatpush2.bf16.msra.mxu0 0
    %630 = vmatprep.subr.bf16.mxu0 0
    %631 = vmatpush2.bf16.msra.mxu0 0
    %632 = vmatprep.subr.bf16.mxu0 0
    %633 = vmatpush2.bf16.msra.mxu0 0
    %634 = vmatprep.mubr.bf16.mxu0 0
    %635 = vmatmul.mubr.bf16.gmra.mxu0 %v600
    %v636 = vpop.f32.mrf.mxu0
    %v637 = vadd.f32 0.0, %v636
    %v638 = vpop.f32.mrf.mxu0
    %v639 = vadd.f32 0.0, %v638
    %v640 = vpop.f32.mrf.mxu0
    %v641 = vpop.f32.mrf.mxu0
    %642 = vdwg.mxu0
    %643 = vmatprep.subr.bf16.mxu0 %v310
    %644 = vmatpush1.bf16.msra.mxu0 %v309
    %645 = vmatprep.subr.bf16.mxu0 %v306
    %646 = vmatpush1.bf16.msra.mxu0 %v305
    %647 = vmatprep.subr.bf16.mxu0 %v302
    %648 = vmatpush1.bf16.msra.mxu0 %v301
    %649 = vmatprep.subr.bf16.mxu0 %v298
    %650 = vmatpush1.bf16.msra.mxu0 %v297
    %651 = vmatprep.subr.bf16.mxu0 %v294
    %652 = vmatpush1.bf16.msra.mxu0 %v293
    %653 = vmatprep.subr.bf16.mxu0 %v290
    %654 = vmatpush1.bf16.msra.mxu0 %v289
    %655 = vmatprep.subr.bf16.mxu0 %v286
    %656 = vmatpush1.bf16.msra.mxu0 %v285
    %657 = vmatprep.subr.bf16.mxu0 %v282
    %658 = vmatpush1.bf16.msra.mxu0 %v281
    %659 = vmatprep.subr.bf16.mxu0 0
    %660 = vmatpush2.bf16.msra.mxu0 0
    %661 = vmatprep.subr.bf16.mxu0 0
    %662 = vmatpush2.bf16.msra.mxu0 0
    %663 = vmatprep.subr.bf16.mxu0 0
    %664 = vmatpush2.bf16.msra.mxu0 0
    %665 = vmatprep.subr.bf16.mxu0 0
    %666 = vmatpush2.bf16.msra.mxu0 0
    %667 = vmatprep.subr.bf16.mxu0 0
    %668 = vmatpush2.bf16.msra.mxu0 0
    %669 = vmatprep.subr.bf16.mxu0 0
    %670 = vmatpush2.bf16.msra.mxu0 0
    %671 = vmatprep.subr.bf16.mxu0 0
    %672 = vmatpush2.bf16.msra.mxu0 0
    %673 = vmatprep.subr.bf16.mxu0 0
    %674 = vmatpush2.bf16.msra.mxu0 0
    %675 = vmatprep.mubr.bf16.mxu0 0
    %676 = vmatmul.mubr.bf16.gmra.mxu0 %v600
    %v677 = vpop.f32.mrf.mxu0
    %v678 = vadd.f32 0.0, %v677
    %v679 = vpop.f32.mrf.mxu0
    %v680 = vadd.f32 0.0, %v679
    %v681 = vpop.f32.mrf.mxu0
    %v682 = vpop.f32.mrf.mxu0
    %683 = vdwg.mxu0
    %v688 = vrot.slane %v637, 5
    %v689 = vrot.slane %v639, 5
    %v690 = vrot.slane %v678, 5
    %v691 = vrot.slane %v680, 5
    %v696 = vadd.f32 %v122, %v688
    %v697 = vadd.f32 %v123, %v689
    %v698 = vadd.f32 %v124, %v690
    %v699 = vadd.f32 %v125, %v691
    %v700 = vxor.u32 %v696, 2147483648
    %v701 = vxor.u32 %v697, 2147483648
    %v702 = vxor.u32 %v698, 2147483648
    %v703 = vmul.f32 %v700, 1.442695
    %v704 = vpow.pop %v703
    %v705 = vmul.f32 %v701, 1.442695
    %v706 = vpow.pop %v705
    %v707 = vmul.f32 %v702, 1.442695
    %v708 = vpow.pop %v707
    %v709 = vadd.f32 %v704, 1.0
    %v710 = vadd.f32 %v706, 1.0
    %v711 = vadd.f32 %v708, 1.0
    %v712 = vrcp.pop %v709
    %v713 = vmul.f32 1.0, %v712
    %v714 = vrcp.pop %v710
    %v715 = vmul.f32 1.0, %v714
    %v716 = vrcp.pop %v711
    %v717 = vmul.f32 1.0, %v716
    %v718 = vtanh.pop %v699
    %v720 = vrot.slane %v595, 7
    %v722 = vmul.f32 %v715, %v720
    %v723 = vmul.f32 %v713, %v718
    %v724 = vadd.f32 %v722, %v723
    %v725 = vtanh.pop %v724
    %v726 = vmul.f32 %v717, %v725
    %v727 = vpack.c.bf16 %v726, %v726
    %v729 = vshrl.u32 %v727, 16
    %v731 = vrot.slane %v729, 1
    %733 = vmatprep.subr.bf16.mxu0 %v308
    %734 = vmatpush1.bf16.msra.mxu0 %v307
    %735 = vmatprep.subr.bf16.mxu0 %v304
    %736 = vmatpush1.bf16.msra.mxu0 %v303
    %737 = vmatprep.subr.bf16.mxu0 %v300
    %738 = vmatpush1.bf16.msra.mxu0 %v299
    %739 = vmatprep.subr.bf16.mxu0 %v296
    %740 = vmatpush1.bf16.msra.mxu0 %v295
    %741 = vmatprep.subr.bf16.mxu0 %v292
    %742 = vmatpush1.bf16.msra.mxu0 %v291
    %743 = vmatprep.subr.bf16.mxu0 %v288
    %744 = vmatpush1.bf16.msra.mxu0 %v287
    %745 = vmatprep.subr.bf16.mxu0 %v284
    %746 = vmatpush1.bf16.msra.mxu0 %v283
    %747 = vmatprep.subr.bf16.mxu0 %v280
    %748 = vmatpush1.bf16.msra.mxu0 %v279
    %749 = vmatprep.subr.bf16.mxu0 0
    %750 = vmatpush2.bf16.msra.mxu0 0
    %751 = vmatprep.subr.bf16.mxu0 0
    %752 = vmatpush2.bf16.msra.mxu0 0
    %753 = vmatprep.subr.bf16.mxu0 0
    %754 = vmatpush2.bf16.msra.mxu0 0
    %755 = vmatprep.subr.bf16.mxu0 0
    %756 = vmatpush2.bf16.msra.mxu0 0
    %757 = vmatprep.subr.bf16.mxu0 0
    %758 = vmatpush2.bf16.msra.mxu0 0
    %759 = vmatprep.subr.bf16.mxu0 0
    %760 = vmatpush2.bf16.msra.mxu0 0
    %761 = vmatprep.subr.bf16.mxu0 0
    %762 = vmatpush2.bf16.msra.mxu0 0
    %763 = vmatprep.subr.bf16.mxu0 0
    %764 = vmatpush2.bf16.msra.mxu0 0
    %765 = vmatprep.mubr.bf16.mxu0 0
    %766 = vmatmul.mubr.bf16.gmra.mxu0 %v731
    %v767 = vpop.f32.mrf.mxu0
    %v768 = vadd.f32 0.0, %v767
    %v769 = vpop.f32.mrf.mxu0
    %v770 = vadd.f32 0.0, %v769
    %v771 = vpop.f32.mrf.mxu0
    %v772 = vpop.f32.mrf.mxu0
    %773 = vdwg.mxu0
    %774 = vmatprep.subr.bf16.mxu0 %v310
    %775 = vmatpush1.bf16.msra.mxu0 %v309
    %776 = vmatprep.subr.bf16.mxu0 %v306
    %777 = vmatpush1.bf16.msra.mxu0 %v305
    %778 = vmatprep.subr.bf16.mxu0 %v302
    %779 = vmatpush1.bf16.msra.mxu0 %v301
    %780 = vmatprep.subr.bf16.mxu0 %v298
    %781 = vmatpush1.bf16.msra.mxu0 %v297
    %782 = vmatprep.subr.bf16.mxu0 %v294
    %783 = vmatpush1.bf16.msra.mxu0 %v293
    %784 = vmatprep.subr.bf16.mxu0 %v290
    %785 = vmatpush1.bf16.msra.mxu0 %v289
    %786 = vmatprep.subr.bf16.mxu0 %v286
    %787 = vmatpush1.bf16.msra.mxu0 %v285
    %788 = vmatprep.subr.bf16.mxu0 %v282
    %789 = vmatpush1.bf16.msra.mxu0 %v281
    %790 = vmatprep.subr.bf16.mxu0 0
    %791 = vmatpush2.bf16.msra.mxu0 0
    %792 = vmatprep.subr.bf16.mxu0 0
    %793 = vmatpush2.bf16.msra.mxu0 0
    %794 = vmatprep.subr.bf16.mxu0 0
    %795 = vmatpush2.bf16.msra.mxu0 0
    %796 = vmatprep.subr.bf16.mxu0 0
    %797 = vmatpush2.bf16.msra.mxu0 0
    %798 = vmatprep.subr.bf16.mxu0 0
    %799 = vmatpush2.bf16.msra.mxu0 0
    %800 = vmatprep.subr.bf16.mxu0 0
    %801 = vmatpush2.bf16.msra.mxu0 0
    %802 = vmatprep.subr.bf16.mxu0 0
    %803 = vmatpush2.bf16.msra.mxu0 0
    %804 = vmatprep.subr.bf16.mxu0 0
    %805 = vmatpush2.bf16.msra.mxu0 0
    %806 = vmatprep.mubr.bf16.mxu0 0
    %807 = vmatmul.mubr.bf16.gmra.mxu0 %v731
    %v808 = vpop.f32.mrf.mxu0
    %v809 = vadd.f32 0.0, %v808
    %v810 = vpop.f32.mrf.mxu0
    %v811 = vadd.f32 0.0, %v810
    %v812 = vpop.f32.mrf.mxu0
    %v813 = vpop.f32.mrf.mxu0
    %814 = vdwg.mxu0
    %v819 = vrot.slane %v768, 4
    %v820 = vrot.slane %v770, 4
    %v821 = vrot.slane %v809, 4
    %v822 = vrot.slane %v811, 4
    %v827 = vadd.f32 %v122, %v819
    %v828 = vadd.f32 %v123, %v820
    %v829 = vadd.f32 %v124, %v821
    %v830 = vadd.f32 %v125, %v822
    %v831 = vxor.u32 %v827, 2147483648
    %v832 = vxor.u32 %v828, 2147483648
    %v833 = vxor.u32 %v829, 2147483648
    %v834 = vmul.f32 %v831, 1.442695
    %v835 = vpow.pop %v834
    %v836 = vmul.f32 %v832, 1.442695
    %v837 = vpow.pop %v836
    %v838 = vmul.f32 %v833, 1.442695
    %v839 = vpow.pop %v838
    %v840 = vadd.f32 %v835, 1.0
    %v841 = vadd.f32 %v837, 1.0
    %v842 = vadd.f32 %v839, 1.0
    %v843 = vrcp.pop %v840
    %v844 = vmul.f32 1.0, %v843
    %v845 = vrcp.pop %v841
    %v846 = vmul.f32 1.0, %v845
    %v847 = vrcp.pop %v842
    %v848 = vmul.f32 1.0, %v847
    %v849 = vtanh.pop %v830
    %v851 = vrot.slane %v724, 7
    %v853 = vmul.f32 %v846, %v851
    %v854 = vmul.f32 %v844, %v849
    %v855 = vadd.f32 %v853, %v854
    %v856 = vtanh.pop %v855
    %v857 = vmul.f32 %v848, %v856
    %v858 = vpack.c.bf16 %v857, %v857
    %v860 = vrot.slane %v858, 2
    %862 = vmatprep.subr.bf16.mxu0 %v308
    %863 = vmatpush1.bf16.msra.mxu0 %v307
    %864 = vmatprep.subr.bf16.mxu0 %v304
    %865 = vmatpush1.bf16.msra.mxu0 %v303
    %866 = vmatprep.subr.bf16.mxu0 %v300
    %867 = vmatpush1.bf16.msra.mxu0 %v299
    %868 = vmatprep.subr.bf16.mxu0 %v296
    %869 = vmatpush1.bf16.msra.mxu0 %v295
    %870 = vmatprep.subr.bf16.mxu0 %v292
    %871 = vmatpush1.bf16.msra.mxu0 %v291
    %872 = vmatprep.subr.bf16.mxu0 %v288
    %873 = vmatpush1.bf16.msra.mxu0 %v287
    %874 = vmatprep.subr.bf16.mxu0 %v284
    %875 = vmatpush1.bf16.msra.mxu0 %v283
    %876 = vmatprep.subr.bf16.mxu0 %v280
    %877 = vmatpush1.bf16.msra.mxu0 %v279
    %878 = vmatprep.subr.bf16.mxu0 0
    %879 = vmatpush2.bf16.msra.mxu0 0
    %880 = vmatprep.subr.bf16.mxu0 0
    %881 = vmatpush2.bf16.msra.mxu0 0
    %882 = vmatprep.subr.bf16.mxu0 0
    %883 = vmatpush2.bf16.msra.mxu0 0
    %884 = vmatprep.subr.bf16.mxu0 0
    %885 = vmatpush2.bf16.msra.mxu0 0
    %886 = vmatprep.subr.bf16.mxu0 0
    %887 = vmatpush2.bf16.msra.mxu0 0
    %888 = vmatprep.subr.bf16.mxu0 0
    %889 = vmatpush2.bf16.msra.mxu0 0
    %890 = vmatprep.subr.bf16.mxu0 0
    %891 = vmatpush2.bf16.msra.mxu0 0
    %892 = vmatprep.subr.bf16.mxu0 0
    %893 = vmatpush2.bf16.msra.mxu0 0
    %894 = vmatprep.mubr.bf16.mxu0 0
    %895 = vmatmul.mubr.bf16.gmra.mxu0 %v860
    %v896 = vpop.f32.mrf.mxu0
    %v897 = vadd.f32 0.0, %v896
    %v898 = vpop.f32.mrf.mxu0
    %v899 = vadd.f32 0.0, %v898
    %v900 = vpop.f32.mrf.mxu0
    %v901 = vpop.f32.mrf.mxu0
    %902 = vdwg.mxu0
    %903 = vmatprep.subr.bf16.mxu0 %v310
    %904 = vmatpush1.bf16.msra.mxu0 %v309
    %905 = vmatprep.subr.bf16.mxu0 %v306
    %906 = vmatpush1.bf16.msra.mxu0 %v305
    %907 = vmatprep.subr.bf16.mxu0 %v302
    %908 = vmatpush1.bf16.msra.mxu0 %v301
    %909 = vmatprep.subr.bf16.mxu0 %v298
    %910 = vmatpush1.bf16.msra.mxu0 %v297
    %911 = vmatprep.subr.bf16.mxu0 %v294
    %912 = vmatpush1.bf16.msra.mxu0 %v293
    %913 = vmatprep.subr.bf16.mxu0 %v290
    %914 = vmatpush1.bf16.msra.mxu0 %v289
    %915 = vmatprep.subr.bf16.mxu0 %v286
    %916 = vmatpush1.bf16.msra.mxu0 %v285
    %917 = vmatprep.subr.bf16.mxu0 %v282
    %918 = vmatpush1.bf16.msra.mxu0 %v281
    %919 = vmatprep.subr.bf16.mxu0 0
    %920 = vmatpush2.bf16.msra.mxu0 0
    %921 = vmatprep.subr.bf16.mxu0 0
    %922 = vmatpush2.bf16.msra.mxu0 0
    %923 = vmatprep.subr.bf16.mxu0 0
    %924 = vmatpush2.bf16.msra.mxu0 0
    %925 = vmatprep.subr.bf16.mxu0 0
    %926 = vmatpush2.bf16.msra.mxu0 0
    %927 = vmatprep.subr.bf16.mxu0 0
    %928 = vmatpush2.bf16.msra.mxu0 0
    %929 = vmatprep.subr.bf16.mxu0 0
    %930 = vmatpush2.bf16.msra.mxu0 0
    %931 = vmatprep.subr.bf16.mxu0 0
    %932 = vmatpush2.bf16.msra.mxu0 0
    %933 = vmatprep.subr.bf16.mxu0 0
    %934 = vmatpush2.bf16.msra.mxu0 0
    %935 = vmatprep.mubr.bf16.mxu0 0
    %936 = vmatmul.mubr.bf16.gmra.mxu0 %v860
    %v937 = vpop.f32.mrf.mxu0
    %v938 = vadd.f32 0.0, %v937
    %v939 = vpop.f32.mrf.mxu0
    %v940 = vadd.f32 0.0, %v939
    %v941 = vpop.f32.mrf.mxu0
    %v942 = vpop.f32.mrf.mxu0
    %943 = vdwg.mxu0
    %v948 = vrot.slane %v897, 3
    %v949 = vrot.slane %v899, 3
    %v950 = vrot.slane %v938, 3
    %v951 = vrot.slane %v940, 3
    %v956 = vadd.f32 %v122, %v948
    %v957 = vadd.f32 %v123, %v949
    %v958 = vadd.f32 %v124, %v950
    %v959 = vadd.f32 %v125, %v951
    %v960 = vxor.u32 %v956, 2147483648
    %v961 = vxor.u32 %v957, 2147483648
    %v962 = vxor.u32 %v958, 2147483648
    %v963 = vmul.f32 %v960, 1.442695
    %v964 = vpow.pop %v963
    %v965 = vmul.f32 %v961, 1.442695
    %v966 = vpow.pop %v965
    %v967 = vmul.f32 %v962, 1.442695
    %v968 = vpow.pop %v967
    %v969 = vadd.f32 %v964, 1.0
    %v970 = vadd.f32 %v966, 1.0
    %v971 = vadd.f32 %v968, 1.0
    %v972 = vrcp.pop %v969
    %v973 = vmul.f32 1.0, %v972
    %v974 = vrcp.pop %v970
    %v975 = vmul.f32 1.0, %v974
    %v976 = vrcp.pop %v971
    %v977 = vmul.f32 1.0, %v976
    %v978 = vtanh.pop %v959
    %v980 = vrot.slane %v855, 7
    %v982 = vmul.f32 %v975, %v980
    %v983 = vmul.f32 %v973, %v978
    %v984 = vadd.f32 %v982, %v983
    %v985 = vtanh.pop %v984
    %v986 = vmul.f32 %v977, %v985
    %v987 = vpack.c.bf16 %v986, %v986
    %v989 = vshrl.u32 %v987, 16
    %v991 = vrot.slane %v989, 2
    %993 = vmatprep.subr.bf16.mxu0 %v308
    %994 = vmatpush1.bf16.msra.mxu0 %v307
    %995 = vmatprep.subr.bf16.mxu0 %v304
    %996 = vmatpush1.bf16.msra.mxu0 %v303
    %997 = vmatprep.subr.bf16.mxu0 %v300
    %998 = vmatpush1.bf16.msra.mxu0 %v299
    %999 = vmatprep.subr.bf16.mxu0 %v296
    %1000 = vmatpush1.bf16.msra.mxu0 %v295
    %1001 = vmatprep.subr.bf16.mxu0 %v292
    %1002 = vmatpush1.bf16.msra.mxu0 %v291
    %1003 = vmatprep.subr.bf16.mxu0 %v288
    %1004 = vmatpush1.bf16.msra.mxu0 %v287
    %1005 = vmatprep.subr.bf16.mxu0 %v284
    %1006 = vmatpush1.bf16.msra.mxu0 %v283
    %1007 = vmatprep.subr.bf16.mxu0 %v280
    %1008 = vmatpush1.bf16.msra.mxu0 %v279
    %1009 = vmatprep.subr.bf16.mxu0 0
    %1010 = vmatpush2.bf16.msra.mxu0 0
    %1011 = vmatprep.subr.bf16.mxu0 0
    %1012 = vmatpush2.bf16.msra.mxu0 0
    %1013 = vmatprep.subr.bf16.mxu0 0
    %1014 = vmatpush2.bf16.msra.mxu0 0
    %1015 = vmatprep.subr.bf16.mxu0 0
    %1016 = vmatpush2.bf16.msra.mxu0 0
    %1017 = vmatprep.subr.bf16.mxu0 0
    %1018 = vmatpush2.bf16.msra.mxu0 0
    %1019 = vmatprep.subr.bf16.mxu0 0
    %1020 = vmatpush2.bf16.msra.mxu0 0
    %1021 = vmatprep.subr.bf16.mxu0 0
    %1022 = vmatpush2.bf16.msra.mxu0 0
    %1023 = vmatprep.subr.bf16.mxu0 0
    %1024 = vmatpush2.bf16.msra.mxu0 0
    %1025 = vmatprep.mubr.bf16.mxu0 0
    %1026 = vmatmul.mubr.bf16.gmra.mxu0 %v991
    %v1027 = vpop.f32.mrf.mxu0
    %v1028 = vadd.f32 0.0, %v1027
    %v1029 = vpop.f32.mrf.mxu0
    %v1030 = vadd.f32 0.0, %v1029
    %v1031 = vpop.f32.mrf.mxu0
    %v1032 = vpop.f32.mrf.mxu0
    %1033 = vdwg.mxu0
    %1034 = vmatprep.subr.bf16.mxu0 %v310
    %1035 = vmatpush1.bf16.msra.mxu0 %v309
    %1036 = vmatprep.subr.bf16.mxu0 %v306
    %1037 = vmatpush1.bf16.msra.mxu0 %v305
    %1038 = vmatprep.subr.bf16.mxu0 %v302
    %1039 = vmatpush1.bf16.msra.mxu0 %v301
    %1040 = vmatprep.subr.bf16.mxu0 %v298
    %1041 = vmatpush1.bf16.msra.mxu0 %v297
    %1042 = vmatprep.subr.bf16.mxu0 %v294
    %1043 = vmatpush1.bf16.msra.mxu0 %v293
    %1044 = vmatprep.subr.bf16.mxu0 %v290
    %1045 = vmatpush1.bf16.msra.mxu0 %v289
    %1046 = vmatprep.subr.bf16.mxu0 %v286
    %1047 = vmatpush1.bf16.msra.mxu0 %v285
    %1048 = vmatprep.subr.bf16.mxu0 %v282
    %1049 = vmatpush1.bf16.msra.mxu0 %v281
    %1050 = vmatprep.subr.bf16.mxu0 0
    %1051 = vmatpush2.bf16.msra.mxu0 0
    %1052 = vmatprep.subr.bf16.mxu0 0
    %1053 = vmatpush2.bf16.msra.mxu0 0
    %1054 = vmatprep.subr.bf16.mxu0 0
    %1055 = vmatpush2.bf16.msra.mxu0 0
    %1056 = vmatprep.subr.bf16.mxu0 0
    %1057 = vmatpush2.bf16.msra.mxu0 0
    %1058 = vmatprep.subr.bf16.mxu0 0
    %1059 = vmatpush2.bf16.msra.mxu0 0
    %1060 = vmatprep.subr.bf16.mxu0 0
    %1061 = vmatpush2.bf16.msra.mxu0 0
    %1062 = vmatprep.subr.bf16.mxu0 0
    %1063 = vmatpush2.bf16.msra.mxu0 0
    %1064 = vmatprep.subr.bf16.mxu0 0
    %1065 = vmatpush2.bf16.msra.mxu0 0
    %1066 = vmatprep.mubr.bf16.mxu0 0
    %1067 = vmatmul.mubr.bf16.gmra.mxu0 %v991
    %v1068 = vpop.f32.mrf.mxu0
    %v1069 = vadd.f32 0.0, %v1068
    %v1070 = vpop.f32.mrf.mxu0
    %v1071 = vadd.f32 0.0, %v1070
    %v1072 = vpop.f32.mrf.mxu0
    %v1073 = vpop.f32.mrf.mxu0
    %1074 = vdwg.mxu0
    %v1079 = vrot.slane %v1028, 2
    %v1080 = vrot.slane %v1030, 2
    %v1081 = vrot.slane %v1069, 2
    %v1082 = vrot.slane %v1071, 2
    %v1087 = vadd.f32 %v122, %v1079
    %v1088 = vadd.f32 %v123, %v1080
    %v1089 = vadd.f32 %v124, %v1081
    %v1090 = vadd.f32 %v125, %v1082
    %v1091 = vxor.u32 %v1087, 2147483648
    %v1092 = vxor.u32 %v1088, 2147483648
    %v1093 = vxor.u32 %v1089, 2147483648
    %v1094 = vmul.f32 %v1091, 1.442695
    %v1095 = vpow.pop %v1094
    %v1096 = vmul.f32 %v1092, 1.442695
    %v1097 = vpow.pop %v1096
    %v1098 = vmul.f32 %v1093, 1.442695
    %v1099 = vpow.pop %v1098
    %v1100 = vadd.f32 %v1095, 1.0
    %v1101 = vadd.f32 %v1097, 1.0
    %v1102 = vadd.f32 %v1099, 1.0
    %v1103 = vrcp.pop %v1100
    %v1104 = vmul.f32 1.0, %v1103
    %v1105 = vrcp.pop %v1101
    %v1106 = vmul.f32 1.0, %v1105
    %v1107 = vrcp.pop %v1102
    %v1108 = vmul.f32 1.0, %v1107
    %v1109 = vtanh.pop %v1090
    %v1111 = vrot.slane %v984, 7
    %v1113 = vmul.f32 %v1106, %v1111
    %v1114 = vmul.f32 %v1104, %v1109
    %v1115 = vadd.f32 %v1113, %v1114
    %v1116 = vtanh.pop %v1115
    %v1117 = vmul.f32 %v1108, %v1116
    %v1118 = vpack.c.bf16 %v1117, %v1117
    %v1120 = vrot.slane %v1118, 3
    %1122 = vmatprep.subr.bf16.mxu0 %v308
    %1123 = vmatpush1.bf16.msra.mxu0 %v307
    %1124 = vmatprep.subr.bf16.mxu0 %v304
    %1125 = vmatpush1.bf16.msra.mxu0 %v303
    %1126 = vmatprep.subr.bf16.mxu0 %v300
    %1127 = vmatpush1.bf16.msra.mxu0 %v299
    %1128 = vmatprep.subr.bf16.mxu0 %v296
    %1129 = vmatpush1.bf16.msra.mxu0 %v295
    %1130 = vmatprep.subr.bf16.mxu0 %v292
    %1131 = vmatpush1.bf16.msra.mxu0 %v291
    %1132 = vmatprep.subr.bf16.mxu0 %v288
    %1133 = vmatpush1.bf16.msra.mxu0 %v287
    %1134 = vmatprep.subr.bf16.mxu0 %v284
    %1135 = vmatpush1.bf16.msra.mxu0 %v283
    %1136 = vmatprep.subr.bf16.mxu0 %v280
    %1137 = vmatpush1.bf16.msra.mxu0 %v279
    %1138 = vmatprep.subr.bf16.mxu0 0
    %1139 = vmatpush2.bf16.msra.mxu0 0
    %1140 = vmatprep.subr.bf16.mxu0 0
    %1141 = vmatpush2.bf16.msra.mxu0 0
    %1142 = vmatprep.subr.bf16.mxu0 0
    %1143 = vmatpush2.bf16.msra.mxu0 0
    %1144 = vmatprep.subr.bf16.mxu0 0
    %1145 = vmatpush2.bf16.msra.mxu0 0
    %1146 = vmatprep.subr.bf16.mxu0 0
    %1147 = vmatpush2.bf16.msra.mxu0 0
    %1148 = vmatprep.subr.bf16.mxu0 0
    %1149 = vmatpush2.bf16.msra.mxu0 0
    %1150 = vmatprep.subr.bf16.mxu0 0
    %1151 = vmatpush2.bf16.msra.mxu0 0
    %1152 = vmatprep.subr.bf16.mxu0 0
    %1153 = vmatpush2.bf16.msra.mxu0 0
    %1154 = vmatprep.mubr.bf16.mxu0 0
    %1155 = vmatmul.mubr.bf16.gmra.mxu0 %v1120
    %v1156 = vpop.f32.mrf.mxu0
    %v1157 = vadd.f32 0.0, %v1156
    %v1158 = vpop.f32.mrf.mxu0
    %v1159 = vadd.f32 0.0, %v1158
    %v1160 = vpop.f32.mrf.mxu0
    %v1161 = vpop.f32.mrf.mxu0
    %1162 = vdwg.mxu0
    %1163 = vmatprep.subr.bf16.mxu0 %v310
    %1164 = vmatpush1.bf16.msra.mxu0 %v309
    %1165 = vmatprep.subr.bf16.mxu0 %v306
    %1166 = vmatpush1.bf16.msra.mxu0 %v305
    %1167 = vmatprep.subr.bf16.mxu0 %v302
    %1168 = vmatpush1.bf16.msra.mxu0 %v301
    %1169 = vmatprep.subr.bf16.mxu0 %v298
    %1170 = vmatpush1.bf16.msra.mxu0 %v297
    %1171 = vmatprep.subr.bf16.mxu0 %v294
    %1172 = vmatpush1.bf16.msra.mxu0 %v293
    %1173 = vmatprep.subr.bf16.mxu0 %v290
    %1174 = vmatpush1.bf16.msra.mxu0 %v289
    %1175 = vmatprep.subr.bf16.mxu0 %v286
    %1176 = vmatpush1.bf16.msra.mxu0 %v285
    %1177 = vmatprep.subr.bf16.mxu0 %v282
    %1178 = vmatpush1.bf16.msra.mxu0 %v281
    %1179 = vmatprep.subr.bf16.mxu0 0
    %1180 = vmatpush2.bf16.msra.mxu0 0
    %1181 = vmatprep.subr.bf16.mxu0 0
    %1182 = vmatpush2.bf16.msra.mxu0 0
    %1183 = vmatprep.subr.bf16.mxu0 0
    %1184 = vmatpush2.bf16.msra.mxu0 0
    %1185 = vmatprep.subr.bf16.mxu0 0
    %1186 = vmatpush2.bf16.msra.mxu0 0
    %1187 = vmatprep.subr.bf16.mxu0 0
    %1188 = vmatpush2.bf16.msra.mxu0 0
    %1189 = vmatprep.subr.bf16.mxu0 0
    %1190 = vmatpush2.bf16.msra.mxu0 0
    %1191 = vmatprep.subr.bf16.mxu0 0
    %1192 = vmatpush2.bf16.msra.mxu0 0
    %1193 = vmatprep.subr.bf16.mxu0 0
    %1194 = vmatpush2.bf16.msra.mxu0 0
    %1195 = vmatprep.mubr.bf16.mxu0 0
    %1196 = vmatmul.mubr.bf16.gmra.mxu0 %v1120
    %v1197 = vpop.f32.mrf.mxu0
    %v1198 = vadd.f32 0.0, %v1197
    %v1199 = vpop.f32.mrf.mxu0
    %v1200 = vadd.f32 0.0, %v1199
    %v1201 = vpop.f32.mrf.mxu0
    %v1202 = vpop.f32.mrf.mxu0
    %1203 = vdwg.mxu0
    %v1208 = vrot.slane %v1157, 1
    %v1209 = vrot.slane %v1159, 1
    %v1210 = vrot.slane %v1198, 1
    %v1211 = vrot.slane %v1200, 1
    %v1216 = vadd.f32 %v122, %v1208
    %v1217 = vadd.f32 %v123, %v1209
    %v1218 = vadd.f32 %v124, %v1210
    %v1219 = vadd.f32 %v125, %v1211
    %v1220 = vxor.u32 %v1216, 2147483648
    %v1221 = vxor.u32 %v1217, 2147483648
    %v1222 = vxor.u32 %v1218, 2147483648
    %v1223 = vmul.f32 %v1220, 1.442695
    %v1224 = vpow.pop %v1223
    %v1225 = vmul.f32 %v1221, 1.442695
    %v1226 = vpow.pop %v1225
    %v1227 = vmul.f32 %v1222, 1.442695
    %v1228 = vpow.pop %v1227
    %v1229 = vadd.f32 %v1224, 1.0
    %v1230 = vadd.f32 %v1226, 1.0
    %v1231 = vadd.f32 %v1228, 1.0
    %v1232 = vrcp.pop %v1229
    %v1233 = vmul.f32 1.0, %v1232
    %v1234 = vrcp.pop %v1230
    %v1235 = vmul.f32 1.0, %v1234
    %v1236 = vrcp.pop %v1231
    %v1237 = vmul.f32 1.0, %v1236
    %v1238 = vtanh.pop %v1219
    %v1240 = vrot.slane %v1115, 7
    %v1242 = vmul.f32 %v1235, %v1240
    %v1243 = vmul.f32 %v1233, %v1238
    %v1244 = vadd.f32 %v1242, %v1243
    %v1245 = vtanh.pop %v1244
    %v1246 = vmul.f32 %v1237, %v1245
    %s1247 = smul.u32 4, 16
    %s1248 = smul.u32 %s1247, 4
    %s1249 = sshll.u32 %s1248, 4
    %1250 = dma.done [#allocation4], %s1249
    %v1251 = vpack.c.bf16 %v1246, %v1246
    %v1252 = vld [vmem:[#allocation2] sm:$0xff]
    %v1253 = vld [vmem:[#allocation2 + $0x8] sm:$0xff]
    %v1254 = vld [vmem:[#allocation2 + $0x10] sm:$0xff]
    %v1255 = vld [vmem:[#allocation2 + $0x18] sm:$0xff]
    %v1256 = vld [vmem:[#allocation2 + $0x20] sm:$0xff]
    %v1257 = vld [vmem:[#allocation2 + $0x28] sm:$0xff]
    %v1258 = vld [vmem:[#allocation2 + $0x30] sm:$0xff]
    %v1259 = vld [vmem:[#allocation2 + $0x38] sm:$0xff]
    %v1260 = vld [vmem:[#allocation2 + $0x40] sm:$0xff]
    %v1261 = vld [vmem:[#allocation2 + $0x48] sm:$0xff]
    %v1262 = vld [vmem:[#allocation2 + $0x50] sm:$0xff]
    %v1263 = vld [vmem:[#allocation2 + $0x58] sm:$0xff]
    %v1264 = vld [vmem:[#allocation2 + $0x60] sm:$0xff]
    %v1265 = vld [vmem:[#allocation2 + $0x68] sm:$0xff]
    %v1266 = vld [vmem:[#allocation2 + $0x70] sm:$0xff]
    %v1267 = vld [vmem:[#allocation2 + $0x78] sm:$0xff]
    %v1268 = vld [vmem:[#allocation2 + $0x80] sm:$0xff]
    %v1269 = vld [vmem:[#allocation2 + $0x88] sm:$0xff]
    %v1270 = vld [vmem:[#allocation2 + $0x90] sm:$0xff]
    %v1271 = vld [vmem:[#allocation2 + $0x98] sm:$0xff]
    %v1272 = vld [vmem:[#allocation2 + $0xa0] sm:$0xff]
    %v1273 = vld [vmem:[#allocation2 + $0xa8] sm:$0xff]
    %v1274 = vld [vmem:[#allocation2 + $0xb0] sm:$0xff]
    %v1275 = vld [vmem:[#allocation2 + $0xb8] sm:$0xff]
    %v1276 = vld [vmem:[#allocation2 + $0xc0] sm:$0xff]
    %v1277 = vld [vmem:[#allocation2 + $0xc8] sm:$0xff]
    %v1278 = vld [vmem:[#allocation2 + $0xd0] sm:$0xff]
    %v1279 = vld [vmem:[#allocation2 + $0xd8] sm:$0xff]
    %v1280 = vld [vmem:[#allocation2 + $0xe0] sm:$0xff]
    %v1281 = vld [vmem:[#allocation2 + $0xe8] sm:$0xff]
    %v1282 = vld [vmem:[#allocation2 + $0xf0] sm:$0xff]
    %v1283 = vld [vmem:[#allocation2 + $0xf8] sm:$0xff]
    %v1284 = vld [vmem:[%s6] sm:$0xf]
    %v1286 = vshrl.u32 %v1251, 16
    %v1288 = vrot.slane %v1286, 3
    %v1322 = vunpack.c.l.b16 %v1252
    %v1323 = vunpack.c.h.b16 %v1252
    %v1324 = vunpack.c.l.b16 %v1253
    %v1325 = vunpack.c.h.b16 %v1253
    %v1326 = vunpack.c.l.b16 %v1254
    %v1327 = vunpack.c.h.b16 %v1254
    %v1328 = vunpack.c.l.b16 %v1255
    %v1329 = vunpack.c.h.b16 %v1255
    %v1330 = vunpack.c.l.b16 %v1256
    %v1331 = vunpack.c.h.b16 %v1256
    %v1332 = vunpack.c.l.b16 %v1257
    %v1333 = vunpack.c.h.b16 %v1257
    %v1334 = vunpack.c.l.b16 %v1258
    %v1335 = vunpack.c.h.b16 %v1258
    %v1336 = vunpack.c.l.b16 %v1259
    %v1337 = vunpack.c.h.b16 %v1259
    %v1338 = vunpack.c.l.b16 %v1260
    %v1339 = vunpack.c.h.b16 %v1260
    %v1340 = vunpack.c.l.b16 %v1261
    %v1341 = vunpack.c.h.b16 %v1261
    %v1342 = vunpack.c.l.b16 %v1262
    %v1343 = vunpack.c.h.b16 %v1262
    %v1344 = vunpack.c.l.b16 %v1263
    %v1345 = vunpack.c.h.b16 %v1263
    %v1346 = vunpack.c.l.b16 %v1264
    %v1347 = vunpack.c.h.b16 %v1264
    %v1348 = vunpack.c.l.b16 %v1265
    %v1349 = vunpack.c.h.b16 %v1265
    %v1350 = vunpack.c.l.b16 %v1266
    %v1351 = vunpack.c.h.b16 %v1266
    %v1352 = vunpack.c.l.b16 %v1267
    %v1353 = vunpack.c.h.b16 %v1267
    %v1354 = vunpack.c.l.b16 %v1268
    %v1355 = vunpack.c.h.b16 %v1268
    %v1356 = vunpack.c.l.b16 %v1269
    %v1357 = vunpack.c.h.b16 %v1269
    %v1358 = vunpack.c.l.b16 %v1270
    %v1359 = vunpack.c.h.b16 %v1270
    %v1360 = vunpack.c.l.b16 %v1271
    %v1361 = vunpack.c.h.b16 %v1271
    %v1362 = vunpack.c.l.b16 %v1272
    %v1363 = vunpack.c.h.b16 %v1272
    %v1364 = vunpack.c.l.b16 %v1273
    %v1365 = vunpack.c.h.b16 %v1273
    %v1366 = vunpack.c.l.b16 %v1274
    %v1367 = vunpack.c.h.b16 %v1274
    %v1368 = vunpack.c.l.b16 %v1275
    %v1369 = vunpack.c.h.b16 %v1275
    %v1370 = vunpack.c.l.b16 %v1276
    %v1371 = vunpack.c.h.b16 %v1276
    %v1372 = vunpack.c.l.b16 %v1277
    %v1373 = vunpack.c.h.b16 %v1277
    %v1374 = vunpack.c.l.b16 %v1278
    %v1375 = vunpack.c.h.b16 %v1278
    %v1376 = vunpack.c.l.b16 %v1279
    %v1377 = vunpack.c.h.b16 %v1279
    %v1378 = vunpack.c.l.b16 %v1280
    %v1379 = vunpack.c.h.b16 %v1280
    %v1380 = vunpack.c.l.b16 %v1281
    %v1381 = vunpack.c.h.b16 %v1281
    %v1382 = vunpack.c.l.b16 %v1282
    %v1383 = vunpack.c.h.b16 %v1282
    %v1384 = vunpack.c.l.b16 %v1283
    %v1385 = vunpack.c.h.b16 %v1283
    %v1386 = vpack.c.b16 %v1326, %v1322
    %v1387 = vpack.c.b16 %v1327, %v1323
    %v1388 = vpack.c.b16 %v1328, %v1324
    %v1389 = vpack.c.b16 %v1329, %v1325
    %v1390 = vpack.c.b16 %v1334, %v1330
    %v1391 = vpack.c.b16 %v1335, %v1331
    %v1392 = vpack.c.b16 %v1336, %v1332
    %v1393 = vpack.c.b16 %v1337, %v1333
    %v1394 = vpack.c.b16 %v1342, %v1338
    %v1395 = vpack.c.b16 %v1343, %v1339
    %v1396 = vpack.c.b16 %v1344, %v1340
    %v1397 = vpack.c.b16 %v1345, %v1341
    %v1398 = vpack.c.b16 %v1350, %v1346
    %v1399 = vpack.c.b16 %v1351, %v1347
    %v1400 = vpack.c.b16 %v1352, %v1348
    %v1401 = vpack.c.b16 %v1353, %v1349
    %v1402 = vpack.c.b16 %v1358, %v1354
    %v1403 = vpack.c.b16 %v1359, %v1355
    %v1404 = vpack.c.b16 %v1360, %v1356
    %v1405 = vpack.c.b16 %v1361, %v1357
    %v1406 = vpack.c.b16 %v1366, %v1362
    %v1407 = vpack.c.b16 %v1367, %v1363
    %v1408 = vpack.c.b16 %v1368, %v1364
    %v1409 = vpack.c.b16 %v1369, %v1365
    %v1410 = vpack.c.b16 %v1374, %v1370
    %v1411 = vpack.c.b16 %v1375, %v1371
    %v1412 = vpack.c.b16 %v1376, %v1372
    %v1413 = vpack.c.b16 %v1377, %v1373
    %v1414 = vpack.c.b16 %v1382, %v1378
    %v1415 = vpack.c.b16 %v1383, %v1379
    %v1416 = vpack.c.b16 %v1384, %v1380
    %v1417 = vpack.c.b16 %v1385, %v1381
    %v1451 = vlaneseq
    %v1452 = vshrl.u32 %v1451, 7
    %v1453 = vsub.s32 0, %v1452
    %v1454 = vrot.slane %v1284, %v1453
    %v1455 = vlaneseq
    %v1456 = vshrl.u32 %v1455, 7
    %v1457 = vsub.s32 1, %v1456
    %v1458 = vrot.slane %v1284, %v1457
    %v1459 = vlaneseq
    %v1460 = vshrl.u32 %v1459, 7
    %v1461 = vsub.s32 2, %v1460
    %v1462 = vrot.slane %v1284, %v1461
    %v1463 = vlaneseq
    %v1464 = vshrl.u32 %v1463, 7
    %v1465 = vsub.s32 3, %v1464
    %v1466 = vrot.slane %v1284, %v1465
    %1471 = vmatprep.subr.bf16.mxu0 %v1415
    %1472 = vmatpush1.bf16.msra.mxu0 %v1414
    %1473 = vmatprep.subr.bf16.mxu0 %v1411
    %1474 = vmatpush1.bf16.msra.mxu0 %v1410
    %1475 = vmatprep.subr.bf16.mxu0 %v1407
    %1476 = vmatpush1.bf16.msra.mxu0 %v1406
    %1477 = vmatprep.subr.bf16.mxu0 %v1403
    %1478 = vmatpush1.bf16.msra.mxu0 %v1402
    %1479 = vmatprep.subr.bf16.mxu0 %v1399
    %1480 = vmatpush1.bf16.msra.mxu0 %v1398
    %1481 = vmatprep.subr.bf16.mxu0 %v1395
    %1482 = vmatpush1.bf16.msra.mxu0 %v1394
    %1483 = vmatprep.subr.bf16.mxu0 %v1391
    %1484 = vmatpush1.bf16.msra.mxu0 %v1390
    %1485 = vmatprep.subr.bf16.mxu0 %v1387
    %1486 = vmatpush1.bf16.msra.mxu0 %v1386
    %1487 = vmatprep.subr.bf16.mxu0 0
    %1488 = vmatpush2.bf16.msra.mxu0 0
    %1489 = vmatprep.subr.bf16.mxu0 0
    %1490 = vmatpush2.bf16.msra.mxu0 0
    %1491 = vmatprep.subr.bf16.mxu0 0
    %1492 = vmatpush2.bf16.msra.mxu0 0
    %1493 = vmatprep.subr.bf16.mxu0 0
    %1494 = vmatpush2.bf16.msra.mxu0 0
    %1495 = vmatprep.subr.bf16.mxu0 0
    %1496 = vmatpush2.bf16.msra.mxu0 0
    %1497 = vmatprep.subr.bf16.mxu0 0
    %1498 = vmatpush2.bf16.msra.mxu0 0
    %1499 = vmatprep.subr.bf16.mxu0 0
    %1500 = vmatpush2.bf16.msra.mxu0 0
    %1501 = vmatprep.subr.bf16.mxu0 0
    %1502 = vmatpush2.bf16.msra.mxu0 0
    %1503 = vmatprep.mubr.bf16.mxu0 0
    %1504 = vmatmul.mubr.bf16.gmra.mxu0 %v1288
    %v1505 = vpop.f32.mrf.mxu0
    %v1506 = vadd.f32 %v1454, %v1505
    %v1507 = vpop.f32.mrf.mxu0
    %v1508 = vadd.f32 %v1458, %v1507
    %v1509 = vpop.f32.mrf.mxu0
    %v1510 = vpop.f32.mrf.mxu0
    %1511 = vdwg.mxu0
    %1512 = vmatprep.subr.bf16.mxu0 %v1417
    %1513 = vmatpush1.bf16.msra.mxu0 %v1416
    %1514 = vmatprep.subr.bf16.mxu0 %v1413
    %1515 = vmatpush1.bf16.msra.mxu0 %v1412
    %1516 = vmatprep.subr.bf16.mxu0 %v1409
    %1517 = vmatpush1.bf16.msra.mxu0 %v1408
    %1518 = vmatprep.subr.bf16.mxu0 %v1405
    %1519 = vmatpush1.bf16.msra.mxu0 %v1404
    %1520 = vmatprep.subr.bf16.mxu0 %v1401
    %1521 = vmatpush1.bf16.msra.mxu0 %v1400
    %1522 = vmatprep.subr.bf16.mxu0 %v1397
    %1523 = vmatpush1.bf16.msra.mxu0 %v1396
    %1524 = vmatprep.subr.bf16.mxu0 %v1393
    %1525 = vmatpush1.bf16.msra.mxu0 %v1392
    %1526 = vmatprep.subr.bf16.mxu0 %v1389
    %1527 = vmatpush1.bf16.msra.mxu0 %v1388
    %1528 = vmatprep.subr.bf16.mxu0 0
    %1529 = vmatpush2.bf16.msra.mxu0 0
    %1530 = vmatprep.subr.bf16.mxu0 0
    %1531 = vmatpush2.bf16.msra.mxu0 0
    %1532 = vmatprep.subr.bf16.mxu0 0
    %1533 = vmatpush2.bf16.msra.mxu0 0
    %1534 = vmatprep.subr.bf16.mxu0 0
    %1535 = vmatpush2.bf16.msra.mxu0 0
    %1536 = vmatprep.subr.bf16.mxu0 0
    %1537 = vmatpush2.bf16.msra.mxu0 0
    %1538 = vmatprep.subr.bf16.mxu0 0
    %1539 = vmatpush2.bf16.msra.mxu0 0
    %1540 = vmatprep.subr.bf16.mxu0 0
    %1541 = vmatpush2.bf16.msra.mxu0 0
    %1542 = vmatprep.subr.bf16.mxu0 0
    %1543 = vmatpush2.bf16.msra.mxu0 0
    %1544 = vmatprep.mubr.bf16.mxu0 0
    %1545 = vmatmul.mubr.bf16.gmra.mxu0 %v1288
    %v1546 = vpop.f32.mrf.mxu0
    %v1547 = vadd.f32 %v1462, %v1546
    %v1548 = vpop.f32.mrf.mxu0
    %v1549 = vadd.f32 %v1466, %v1548
    %v1550 = vpop.f32.mrf.mxu0
    %v1551 = vpop.f32.mrf.mxu0
    %1552 = vdwg.mxu0
    %v1553 = vxor.u32 %v1506, 2147483648
    %v1554 = vxor.u32 %v1508, 2147483648
    %v1555 = vxor.u32 %v1547, 2147483648
    %v1556 = vmul.f32 %v1553, 1.442695
    %v1557 = vpow.pop %v1556
    %v1558 = vmul.f32 %v1554, 1.442695
    %v1559 = vpow.pop %v1558
    %v1560 = vmul.f32 %v1555, 1.442695
    %v1561 = vpow.pop %v1560
    %v1562 = vadd.f32 %v1557, 1.0
    %v1563 = vadd.f32 %v1559, 1.0
    %v1564 = vadd.f32 %v1561, 1.0
    %v1565 = vrcp.pop %v1562
    %v1566 = vmul.f32 1.0, %v1565
    %v1567 = vrcp.pop %v1563
    %v1568 = vmul.f32 1.0, %v1567
    %v1569 = vrcp.pop %v1564
    %v1570 = vmul.f32 1.0, %v1569
    %v1571 = vtanh.pop %v1549
    %v1572 = vmul.f32 %v1568, 0.0
    %v1573 = vmul.f32 %v1566, %v1571
    %v1574 = vadd.f32 %v1572, %v1573
    %v1575 = vtanh.pop %v1574
    %v1576 = vmul.f32 %v1570, %v1575
    %s1577 = sshll.u32 %s1248, 4
    %1578 = dma.done %s56, %s1577
    %v1579 = vld [vmem:[#allocation3] sm:$0xff]
    %v1580 = vld [vmem:[#allocation3 + $0x8] sm:$0xff]
    %v1581 = vld [vmem:[#allocation3 + $0x10] sm:$0xff]
    %v1582 = vld [vmem:[#allocation3 + $0x18] sm:$0xff]
    %v1583 = vld [vmem:[#allocation3 + $0x20] sm:$0xff]
    %v1584 = vld [vmem:[#allocation3 + $0x28] sm:$0xff]
    %v1585 = vld [vmem:[#allocation3 + $0x30] sm:$0xff]
    %v1586 = vld [vmem:[#allocation3 + $0x38] sm:$0xff]
    %v1587 = vld [vmem:[#allocation3 + $0x40] sm:$0xff]
    %v1588 = vld [vmem:[#allocation3 + $0x48] sm:$0xff]
    %v1589 = vld [vmem:[#allocation3 + $0x50] sm:$0xff]
    %v1590 = vld [vmem:[#allocation3 + $0x58] sm:$0xff]
    %v1591 = vld [vmem:[#allocation3 + $0x60] sm:$0xff]
    %v1592 = vld [vmem:[#allocation3 + $0x68] sm:$0xff]
    %v1593 = vld [vmem:[#allocation3 + $0x70] sm:$0xff]
    %v1594 = vld [vmem:[#allocation3 + $0x78] sm:$0xff]
    %v1595 = vld [vmem:[#allocation3 + $0x80] sm:$0xff]
    %v1596 = vld [vmem:[#allocation3 + $0x88] sm:$0xff]
    %v1597 = vld [vmem:[#allocation3 + $0x90] sm:$0xff]
    %v1598 = vld [vmem:[#allocation3 + $0x98] sm:$0xff]
    %v1599 = vld [vmem:[#allocation3 + $0xa0] sm:$0xff]
    %v1600 = vld [vmem:[#allocation3 + $0xa8] sm:$0xff]
    %v1601 = vld [vmem:[#allocation3 + $0xb0] sm:$0xff]
    %v1602 = vld [vmem:[#allocation3 + $0xb8] sm:$0xff]
    %v1603 = vld [vmem:[#allocation3 + $0xc0] sm:$0xff]
    %v1604 = vld [vmem:[#allocation3 + $0xc8] sm:$0xff]
    %v1605 = vld [vmem:[#allocation3 + $0xd0] sm:$0xff]
    %v1606 = vld [vmem:[#allocation3 + $0xd8] sm:$0xff]
    %v1607 = vld [vmem:[#allocation3 + $0xe0] sm:$0xff]
    %v1608 = vld [vmem:[#allocation3 + $0xe8] sm:$0xff]
    %v1609 = vld [vmem:[#allocation3 + $0xf0] sm:$0xff]
    %v1610 = vld [vmem:[#allocation3 + $0xf8] sm:$0xff]
    %v1611 = vpack.c.bf16 %v1576, %v1576
    %v1644 = vunpack.c.l.b16 %v1579
    %v1645 = vunpack.c.h.b16 %v1579
    %v1646 = vunpack.c.l.b16 %v1580
    %v1647 = vunpack.c.h.b16 %v1580
    %v1648 = vunpack.c.l.b16 %v1581
    %v1649 = vunpack.c.h.b16 %v1581
    %v1650 = vunpack.c.l.b16 %v1582
    %v1651 = vunpack.c.h.b16 %v1582
    %v1652 = vunpack.c.l.b16 %v1583
    %v1653 = vunpack.c.h.b16 %v1583
    %v1654 = vunpack.c.l.b16 %v1584
    %v1655 = vunpack.c.h.b16 %v1584
    %v1656 = vunpack.c.l.b16 %v1585
    %v1657 = vunpack.c.h.b16 %v1585
    %v1658 = vunpack.c.l.b16 %v1586
    %v1659 = vunpack.c.h.b16 %v1586
    %v1660 = vunpack.c.l.b16 %v1587
    %v1661 = vunpack.c.h.b16 %v1587
    %v1662 = vunpack.c.l.b16 %v1588
    %v1663 = vunpack.c.h.b16 %v1588
    %v1664 = vunpack.c.l.b16 %v1589
    %v1665 = vunpack.c.h.b16 %v1589
    %v1666 = vunpack.c.l.b16 %v1590
    %v1667 = vunpack.c.h.b16 %v1590
    %v1668 = vunpack.c.l.b16 %v1591
    %v1669 = vunpack.c.h.b16 %v1591
    %v1670 = vunpack.c.l.b16 %v1592
    %v1671 = vunpack.c.h.b16 %v1592
    %v1672 = vunpack.c.l.b16 %v1593
    %v1673 = vunpack.c.h.b16 %v1593
    %v1674 = vunpack.c.l.b16 %v1594
    %v1675 = vunpack.c.h.b16 %v1594
    %v1676 = vunpack.c.l.b16 %v1595
    %v1677 = vunpack.c.h.b16 %v1595
    %v1678 = vunpack.c.l.b16 %v1596
    %v1679 = vunpack.c.h.b16 %v1596
    %v1680 = vunpack.c.l.b16 %v1597
    %v1681 = vunpack.c.h.b16 %v1597
    %v1682 = vunpack.c.l.b16 %v1598
    %v1683 = vunpack.c.h.b16 %v1598
    %v1684 = vunpack.c.l.b16 %v1599
    %v1685 = vunpack.c.h.b16 %v1599
    %v1686 = vunpack.c.l.b16 %v1600
    %v1687 = vunpack.c.h.b16 %v1600
    %v1688 = vunpack.c.l.b16 %v1601
    %v1689 = vunpack.c.h.b16 %v1601
    %v1690 = vunpack.c.l.b16 %v1602
    %v1691 = vunpack.c.h.b16 %v1602
    %v1692 = vunpack.c.l.b16 %v1603
    %v1693 = vunpack.c.h.b16 %v1603
    %v1694 = vunpack.c.l.b16 %v1604
    %v1695 = vunpack.c.h.b16 %v1604
    %v1696 = vunpack.c.l.b16 %v1605
    %v1697 = vunpack.c.h.b16 %v1605
    %v1698 = vunpack.c.l.b16 %v1606
    %v1699 = vunpack.c.h.b16 %v1606
    %v1700 = vunpack.c.l.b16 %v1607
    %v1701 = vunpack.c.h.b16 %v1607
    %v1702 = vunpack.c.l.b16 %v1608
    %v1703 = vunpack.c.h.b16 %v1608
    %v1704 = vunpack.c.l.b16 %v1609
    %v1705 = vunpack.c.h.b16 %v1609
    %v1706 = vunpack.c.l.b16 %v1610
    %v1707 = vunpack.c.h.b16 %v1610
    %v1708 = vpack.c.b16 %v1648, %v1644
    %v1709 = vpack.c.b16 %v1649, %v1645
    %v1710 = vpack.c.b16 %v1650, %v1646
    %v1711 = vpack.c.b16 %v1651, %v1647
    %v1712 = vpack.c.b16 %v1656, %v1652
    %v1713 = vpack.c.b16 %v1657, %v1653
    %v1714 = vpack.c.b16 %v1658, %v1654
    %v1715 = vpack.c.b16 %v1659, %v1655
    %v1716 = vpack.c.b16 %v1664, %v1660
    %v1717 = vpack.c.b16 %v1665, %v1661
    %v1718 = vpack.c.b16 %v1666, %v1662
    %v1719 = vpack.c.b16 %v1667, %v1663
    %v1720 = vpack.c.b16 %v1672, %v1668
    %v1721 = vpack.c.b16 %v1673, %v1669
    %v1722 = vpack.c.b16 %v1674, %v1670
    %v1723 = vpack.c.b16 %v1675, %v1671
    %v1724 = vpack.c.b16 %v1680, %v1676
    %v1725 = vpack.c.b16 %v1681, %v1677
    %v1726 = vpack.c.b16 %v1682, %v1678
    %v1727 = vpack.c.b16 %v1683, %v1679
    %v1728 = vpack.c.b16 %v1688, %v1684
    %v1729 = vpack.c.b16 %v1689, %v1685
    %v1730 = vpack.c.b16 %v1690, %v1686
    %v1731 = vpack.c.b16 %v1691, %v1687
    %v1732 = vpack.c.b16 %v1696, %v1692
    %v1733 = vpack.c.b16 %v1697, %v1693
    %v1734 = vpack.c.b16 %v1698, %v1694
    %v1735 = vpack.c.b16 %v1699, %v1695
    %v1736 = vpack.c.b16 %v1704, %v1700
    %v1737 = vpack.c.b16 %v1705, %v1701
    %v1738 = vpack.c.b16 %v1706, %v1702
    %v1739 = vpack.c.b16 %v1707, %v1703
    %1772 = vmatprep.subr.bf16.mxu0 %v1737
    %1773 = vmatpush1.bf16.msra.mxu0 %v1736
    %1774 = vmatprep.subr.bf16.mxu0 %v1733
    %1775 = vmatpush1.bf16.msra.mxu0 %v1732
    %1776 = vmatprep.subr.bf16.mxu0 %v1729
    %1777 = vmatpush1.bf16.msra.mxu0 %v1728
    %1778 = vmatprep.subr.bf16.mxu0 %v1725
    %1779 = vmatpush1.bf16.msra.mxu0 %v1724
    %1780 = vmatprep.subr.bf16.mxu0 %v1721
    %1781 = vmatpush1.bf16.msra.mxu0 %v1720
    %1782 = vmatprep.subr.bf16.mxu0 %v1717
    %1783 = vmatpush1.bf16.msra.mxu0 %v1716
    %1784 = vmatprep.subr.bf16.mxu0 %v1713
    %1785 = vmatpush1.bf16.msra.mxu0 %v1712
    %1786 = vmatprep.subr.bf16.mxu0 %v1709
    %1787 = vmatpush1.bf16.msra.mxu0 %v1708
    %1788 = vmatprep.subr.bf16.mxu0 0
    %1789 = vmatpush2.bf16.msra.mxu0 0
    %1790 = vmatprep.subr.bf16.mxu0 0
    %1791 = vmatpush2.bf16.msra.mxu0 0
    %1792 = vmatprep.subr.bf16.mxu0 0
    %1793 = vmatpush2.bf16.msra.mxu0 0
    %1794 = vmatprep.subr.bf16.mxu0 0
    %1795 = vmatpush2.bf16.msra.mxu0 0
    %1796 = vmatprep.subr.bf16.mxu0 0
    %1797 = vmatpush2.bf16.msra.mxu0 0
    %1798 = vmatprep.subr.bf16.mxu0 0
    %1799 = vmatpush2.bf16.msra.mxu0 0
    %1800 = vmatprep.subr.bf16.mxu0 0
    %1801 = vmatpush2.bf16.msra.mxu0 0
    %1802 = vmatprep.subr.bf16.mxu0 0
    %1803 = vmatpush2.bf16.msra.mxu0 0
    %1804 = vmatprep.mubr.bf16.mxu0 0
    %1805 = vmatmul.mubr.bf16.gmra.mxu0 %v1611
    %v1806 = vpop.f32.mrf.mxu0
    %v1807 = vadd.f32 0.0, %v1806
    %v1808 = vpop.f32.mrf.mxu0
    %v1809 = vadd.f32 0.0, %v1808
    %v1810 = vpop.f32.mrf.mxu0
    %v1811 = vpop.f32.mrf.mxu0
    %1812 = vdwg.mxu0
    %1813 = vmatprep.subr.bf16.mxu0 %v1739
    %1814 = vmatpush1.bf16.msra.mxu0 %v1738
    %1815 = vmatprep.subr.bf16.mxu0 %v1735
    %1816 = vmatpush1.bf16.msra.mxu0 %v1734
    %1817 = vmatprep.subr.bf16.mxu0 %v1731
    %1818 = vmatpush1.bf16.msra.mxu0 %v1730
    %1819 = vmatprep.subr.bf16.mxu0 %v1727
    %1820 = vmatpush1.bf16.msra.mxu0 %v1726
    %1821 = vmatprep.subr.bf16.mxu0 %v1723
    %1822 = vmatpush1.bf16.msra.mxu0 %v1722
    %1823 = vmatprep.subr.bf16.mxu0 %v1719
    %1824 = vmatpush1.bf16.msra.mxu0 %v1718
    %1825 = vmatprep.subr.bf16.mxu0 %v1715
    %1826 = vmatpush1.bf16.msra.mxu0 %v1714
    %1827 = vmatprep.subr.bf16.mxu0 %v1711
    %1828 = vmatpush1.bf16.msra.mxu0 %v1710
    %1829 = vmatprep.subr.bf16.mxu0 0
    %1830 = vmatpush2.bf16.msra.mxu0 0
    %1831 = vmatprep.subr.bf16.mxu0 0
    %1832 = vmatpush2.bf16.msra.mxu0 0
    %1833 = vmatprep.subr.bf16.mxu0 0
    %1834 = vmatpush2.bf16.msra.mxu0 0
    %1835 = vmatprep.subr.bf16.mxu0 0
    %1836 = vmatpush2.bf16.msra.mxu0 0
    %1837 = vmatprep.subr.bf16.mxu0 0
    %1838 = vmatpush2.bf16.msra.mxu0 0
    %1839 = vmatprep.subr.bf16.mxu0 0
    %1840 = vmatpush2.bf16.msra.mxu0 0
    %1841 = vmatprep.subr.bf16.mxu0 0
    %1842 = vmatpush2.bf16.msra.mxu0 0
    %1843 = vmatprep.subr.bf16.mxu0 0
    %1844 = vmatpush2.bf16.msra.mxu0 0
    %1845 = vmatprep.mubr.bf16.mxu0 0
    %1846 = vmatmul.mubr.bf16.gmra.mxu0 %v1611
    %v1847 = vpop.f32.mrf.mxu0
    %v1848 = vadd.f32 0.0, %v1847
    %v1849 = vpop.f32.mrf.mxu0
    %v1850 = vadd.f32 0.0, %v1849
    %v1851 = vpop.f32.mrf.mxu0
    %v1852 = vpop.f32.mrf.mxu0
    %1853 = vdwg.mxu0
    %v1854 = vadd.f32 %v1506, %v1807
    %v1855 = vadd.f32 %v1508, %v1809
    %v1856 = vadd.f32 %v1547, %v1848
    %v1857 = vadd.f32 %v1549, %v1850
    %v1858 = vxor.u32 %v1854, 2147483648
    %v1859 = vxor.u32 %v1855, 2147483648
    %v1860 = vxor.u32 %v1856, 2147483648
    %v1861 = vmul.f32 %v1858, 1.442695
    %v1862 = vpow.pop %v1861
    %v1863 = vmul.f32 %v1859, 1.442695
    %v1864 = vpow.pop %v1863
    %v1865 = vmul.f32 %v1860, 1.442695
    %v1866 = vpow.pop %v1865
    %v1867 = vadd.f32 %v1862, 1.0
    %v1868 = vadd.f32 %v1864, 1.0
    %v1869 = vadd.f32 %v1866, 1.0
    %v1870 = vrcp.pop %v1867
    %v1871 = vmul.f32 1.0, %v1870
    %v1872 = vrcp.pop %v1868
    %v1873 = vmul.f32 1.0, %v1872
    %v1874 = vrcp.pop %v1869
    %v1875 = vmul.f32 1.0, %v1874
    %v1876 = vtanh.pop %v1857
    %v1877 = vmul.f32 %v1873, %v1574
    %v1878 = vmul.f32 %v1871, %v1876
    %v1879 = vadd.f32 %v1877, %v1878
    %v1880 = vtanh.pop %v1879
    %v1881 = vmul.f32 %v1875, %v1880
    %v1882 = vpack.c.bf16 %v1881, %v1881
    %1883 = vmatprep.subr.bf16.mxu0 %v1737
    %1884 = vmatpush1.bf16.msra.mxu0 %v1736
    %1885 = vmatprep.subr.bf16.mxu0 %v1733
    %1886 = vmatpush1.bf16.msra.mxu0 %v1732
    %1887 = vmatprep.subr.bf16.mxu0 %v1729
    %1888 = vmatpush1.bf16.msra.mxu0 %v1728
    %1889 = vmatprep.subr.bf16.mxu0 %v1725
    %1890 = vmatpush1.bf16.msra.mxu0 %v1724
    %1891 = vmatprep.subr.bf16.mxu0 %v1721
    %1892 = vmatpush1.bf16.msra.mxu0 %v1720
    %1893 = vmatprep.subr.bf16.mxu0 %v1717
    %1894 = vmatpush1.bf16.msra.mxu0 %v1716
    %1895 = vmatprep.subr.bf16.mxu0 %v1713
    %1896 = vmatpush1.bf16.msra.mxu0 %v1712
    %1897 = vmatprep.subr.bf16.mxu0 %v1709
    %1898 = vmatpush1.bf16.msra.mxu0 %v1708
    %1899 = vmatprep.subr.bf16.mxu0 0
    %1900 = vmatpush2.bf16.msra.mxu0 0
    %1901 = vmatprep.subr.bf16.mxu0 0
    %1902 = vmatpush2.bf16.msra.mxu0 0
    %1903 = vmatprep.subr.bf16.mxu0 0
    %1904 = vmatpush2.bf16.msra.mxu0 0
    %1905 = vmatprep.subr.bf16.mxu0 0
    %1906 = vmatpush2.bf16.msra.mxu0 0
    %1907 = vmatprep.subr.bf16.mxu0 0
    %1908 = vmatpush2.bf16.msra.mxu0 0
    %1909 = vmatprep.subr.bf16.mxu0 0
    %1910 = vmatpush2.bf16.msra.mxu0 0
    %1911 = vmatprep.subr.bf16.mxu0 0
    %1912 = vmatpush2.bf16.msra.mxu0 0
    %1913 = vmatprep.subr.bf16.mxu0 0
    %1914 = vmatpush2.bf16.msra.mxu0 0
    %1915 = vmatprep.mubr.bf16.mxu0 0
    %1916 = vmatmul.mubr.bf16.gmra.mxu0 %v1882
    %v1917 = vpop.f32.mrf.mxu0
    %v1918 = vadd.f32 0.0, %v1917
    %v1919 = vpop.f32.mrf.mxu0
    %v1920 = vadd.f32 0.0, %v1919
    %v1921 = vpop.f32.mrf.mxu0
    %v1922 = vpop.f32.mrf.mxu0
    %1923 = vdwg.mxu0
    %1924 = vmatprep.subr.bf16.mxu0 %v1739
    %1925 = vmatpush1.bf16.msra.mxu0 %v1738
    %1926 = vmatprep.subr.bf16.mxu0 %v1735
    %1927 = vmatpush1.bf16.msra.mxu0 %v1734
    %1928 = vmatprep.subr.bf16.mxu0 %v1731
    %1929 = vmatpush1.bf16.msra.mxu0 %v1730
    %1930 = vmatprep.subr.bf16.mxu0 %v1727
    %1931 = vmatpush1.bf16.msra.mxu0 %v1726
    %1932 = vmatprep.subr.bf16.mxu0 %v1723
    %1933 = vmatpush1.bf16.msra.mxu0 %v1722
    %1934 = vmatprep.subr.bf16.mxu0 %v1719
    %1935 = vmatpush1.bf16.msra.mxu0 %v1718
    %1936 = vmatprep.subr.bf16.mxu0 %v1715
    %1937 = vmatpush1.bf16.msra.mxu0 %v1714
    %1938 = vmatprep.subr.bf16.mxu0 %v1711
    %1939 = vmatpush1.bf16.msra.mxu0 %v1710
    %1940 = vmatprep.subr.bf16.mxu0 0
    %1941 = vmatpush2.bf16.msra.mxu0 0
    %1942 = vmatprep.subr.bf16.mxu0 0
    %1943 = vmatpush2.bf16.msra.mxu0 0
    %1944 = vmatprep.subr.bf16.mxu0 0
    %1945 = vmatpush2.bf16.msra.mxu0 0
    %1946 = vmatprep.subr.bf16.mxu0 0
    %1947 = vmatpush2.bf16.msra.mxu0 0
    %1948 = vmatprep.subr.bf16.mxu0 0
    %1949 = vmatpush2.bf16.msra.mxu0 0
    %1950 = vmatprep.subr.bf16.mxu0 0
    %1951 = vmatpush2.bf16.msra.mxu0 0
    %1952 = vmatprep.subr.bf16.mxu0 0
    %1953 = vmatpush2.bf16.msra.mxu0 0
    %1954 = vmatprep.subr.bf16.mxu0 0
    %1955 = vmatpush2.bf16.msra.mxu0 0
    %1956 = vmatprep.mubr.bf16.mxu0 0
    %1957 = vmatmul.mubr.bf16.gmra.mxu0 %v1882
    %v1958 = vpop.f32.mrf.mxu0
    %v1959 = vadd.f32 0.0, %v1958
    %v1960 = vpop.f32.mrf.mxu0
    %v1961 = vadd.f32 0.0, %v1960
    %v1962 = vpop.f32.mrf.mxu0
    %v1963 = vpop.f32.mrf.mxu0
    %1964 = vdwg.mxu0
    %v1965 = vadd.f32 %v1506, %v1918
    %v1966 = vadd.f32 %v1508, %v1920
    %v1967 = vadd.f32 %v1547, %v1959
    %v1968 = vadd.f32 %v1549, %v1961
    %v1969 = vxor.u32 %v1965, 2147483648
    %v1970 = vxor.u32 %v1966, 2147483648
    %v1971 = vxor.u32 %v1967, 2147483648
    %v1972 = vmul.f32 %v1969, 1.442695
    %v1973 = vpow.pop %v1972
    %v1974 = vmul.f32 %v1970, 1.442695
    %v1975 = vpow.pop %v1974
    %v1976 = vmul.f32 %v1971, 1.442695
    %v1977 = vpow.pop %v1976
    %v1978 = vadd.f32 %v1973, 1.0
    %v1979 = vadd.f32 %v1975, 1.0
    %v1980 = vadd.f32 %v1977, 1.0
    %v1981 = vrcp.pop %v1978
    %v1982 = vmul.f32 1.0, %v1981
    %v1983 = vrcp.pop %v1979
    %v1984 = vmul.f32 1.0, %v1983
    %v1985 = vrcp.pop %v1980
    %v1986 = vmul.f32 1.0, %v1985
    %v1987 = vtanh.pop %v1968
    %v1988 = vmul.f32 %v1984, %v1879
    %v1989 = vmul.f32 %v1982, %v1987
    %v1990 = vadd.f32 %v1988, %v1989
    %v1991 = vtanh.pop %v1990
    %v1992 = vmul.f32 %v1986, %v1991
    %v1993 = vpack.c.bf16 %v1992, %v1992
    %1994 = vmatprep.subr.bf16.mxu0 %v1737
    %1995 = vmatpush1.bf16.msra.mxu0 %v1736
    %1996 = vmatprep.subr.bf16.mxu0 %v1733
    %1997 = vmatpush1.bf16.msra.mxu0 %v1732
    %1998 = vmatprep.subr.bf16.mxu0 %v1729
    %1999 = vmatpush1.bf16.msra.mxu0 %v1728
    %2000 = vmatprep.subr.bf16.mxu0 %v1725
    %2001 = vmatpush1.bf16.msra.mxu0 %v1724
    %2002 = vmatprep.subr.bf16.mxu0 %v1721
    %2003 = vmatpush1.bf16.msra.mxu0 %v1720
    %2004 = vmatprep.subr.bf16.mxu0 %v1717
    %2005 = vmatpush1.bf16.msra.mxu0 %v1716
    %2006 = vmatprep.subr.bf16.mxu0 %v1713
    %2007 = vmatpush1.bf16.msra.mxu0 %v1712
    %2008 = vmatprep.subr.bf16.mxu0 %v1709
    %2009 = vmatpush1.bf16.msra.mxu0 %v1708
    %2010 = vmatprep.subr.bf16.mxu0 0
    %2011 = vmatpush2.bf16.msra.mxu0 0
    %2012 = vmatprep.subr.bf16.mxu0 0
    %2013 = vmatpush2.bf16.msra.mxu0 0
    %2014 = vmatprep.subr.bf16.mxu0 0
    %2015 = vmatpush2.bf16.msra.mxu0 0
    %2016 = vmatprep.subr.bf16.mxu0 0
    %2017 = vmatpush2.bf16.msra.mxu0 0
    %2018 = vmatprep.subr.bf16.mxu0 0
    %2019 = vmatpush2.bf16.msra.mxu0 0
    %2020 = vmatprep.subr.bf16.mxu0 0
    %2021 = vmatpush2.bf16.msra.mxu0 0
    %2022 = vmatprep.subr.bf16.mxu0 0
    %2023 = vmatpush2.bf16.msra.mxu0 0
    %2024 = vmatprep.subr.bf16.mxu0 0
    %2025 = vmatpush2.bf16.msra.mxu0 0
    %2026 = vmatprep.mubr.bf16.mxu0 0
    %2027 = vmatmul.mubr.bf16.gmra.mxu0 %v1993
    %v2028 = vpop.f32.mrf.mxu0
    %v2029 = vadd.f32 0.0, %v2028
    %v2030 = vpop.f32.mrf.mxu0
    %v2031 = vadd.f32 0.0, %v2030
    %v2032 = vpop.f32.mrf.mxu0
    %v2033 = vpop.f32.mrf.mxu0
    %2034 = vdwg.mxu0
    %2035 = vmatprep.subr.bf16.mxu0 %v1739
    %2036 = vmatpush1.bf16.msra.mxu0 %v1738
    %2037 = vmatprep.subr.bf16.mxu0 %v1735
    %2038 = vmatpush1.bf16.msra.mxu0 %v1734
    %2039 = vmatprep.subr.bf16.mxu0 %v1731
    %2040 = vmatpush1.bf16.msra.mxu0 %v1730
    %2041 = vmatprep.subr.bf16.mxu0 %v1727
    %2042 = vmatpush1.bf16.msra.mxu0 %v1726
    %2043 = vmatprep.subr.bf16.mxu0 %v1723
    %2044 = vmatpush1.bf16.msra.mxu0 %v1722
    %2045 = vmatprep.subr.bf16.mxu0 %v1719
    %2046 = vmatpush1.bf16.msra.mxu0 %v1718
    %2047 = vmatprep.subr.bf16.mxu0 %v1715
    %2048 = vmatpush1.bf16.msra.mxu0 %v1714
    %2049 = vmatprep.subr.bf16.mxu0 %v1711
    %2050 = vmatpush1.bf16.msra.mxu0 %v1710
    %2051 = vmatprep.subr.bf16.mxu0 0
    %2052 = vmatpush2.bf16.msra.mxu0 0
    %2053 = vmatprep.subr.bf16.mxu0 0
    %2054 = vmatpush2.bf16.msra.mxu0 0
    %2055 = vmatprep.subr.bf16.mxu0 0
    %2056 = vmatpush2.bf16.msra.mxu0 0
    %2057 = vmatprep.subr.bf16.mxu0 0
    %2058 = vmatpush2.bf16.msra.mxu0 0
    %2059 = vmatprep.subr.bf16.mxu0 0
    %2060 = vmatpush2.bf16.msra.mxu0 0
    %2061 = vmatprep.subr.bf16.mxu0 0
    %2062 = vmatpush2.bf16.msra.mxu0 0
    %2063 = vmatprep.subr.bf16.mxu0 0
    %2064 = vmatpush2.bf16.msra.mxu0 0
    %2065 = vmatprep.subr.bf16.mxu0 0
    %2066 = vmatpush2.bf16.msra.mxu0 0
    %2067 = vmatprep.mubr.bf16.mxu0 0
    %2068 = vmatmul.mubr.bf16.gmra.mxu0 %v1993
    %v2069 = vpop.f32.mrf.mxu0
    %v2070 = vadd.f32 0.0, %v2069
    %v2071 = vpop.f32.mrf.mxu0
    %v2072 = vadd.f32 0.0, %v2071
    %v2073 = vpop.f32.mrf.mxu0
    %v2074 = vpop.f32.mrf.mxu0
    %2075 = vdwg.mxu0
    %v2076 = vadd.f32 %v1506, %v2029
    %v2077 = vadd.f32 %v1508, %v2031
    %v2078 = vadd.f32 %v1547, %v2070
    %v2079 = vadd.f32 %v1549, %v2072
    %v2080 = vxor.u32 %v2076, 2147483648
    %v2081 = vxor.u32 %v2077, 2147483648
    %v2082 = vxor.u32 %v2078, 2147483648
    %v2083 = vmul.f32 %v2080, 1.442695
    %v2084 = vpow.pop %v2083
    %v2085 = vmul.f32 %v2081, 1.442695
    %v2086 = vpow.pop %v2085
    %v2087 = vmul.f32 %v2082, 1.442695
    %v2088 = vpow.pop %v2087
    %v2089 = vadd.f32 %v2084, 1.0
    %v2090 = vadd.f32 %v2086, 1.0
    %v2091 = vadd.f32 %v2088, 1.0
    %v2092 = vrcp.pop %v2089
    %v2093 = vmul.f32 1.0, %v2092
    %v2094 = vrcp.pop %v2090
    %v2095 = vmul.f32 1.0, %v2094
    %v2096 = vrcp.pop %v2091
    %v2097 = vmul.f32 1.0, %v2096
    %v2098 = vtanh.pop %v2079
    %v2099 = vmul.f32 %v2095, %v1990
    %v2100 = vmul.f32 %v2093, %v2098
    %v2101 = vadd.f32 %v2099, %v2100
    %v2102 = vtanh.pop %v2101
    %v2103 = vmul.f32 %v2097, %v2102
    %v2104 = vpack.c.bf16 %v2103, %v2103
    %2105 = vmatprep.subr.bf16.mxu0 %v1737
    %2106 = vmatpush1.bf16.msra.mxu0 %v1736
    %2107 = vmatprep.subr.bf16.mxu0 %v1733
    %2108 = vmatpush1.bf16.msra.mxu0 %v1732
    %2109 = vmatprep.subr.bf16.mxu0 %v1729
    %2110 = vmatpush1.bf16.msra.mxu0 %v1728
    %2111 = vmatprep.subr.bf16.mxu0 %v1725
    %2112 = vmatpush1.bf16.msra.mxu0 %v1724
    %2113 = vmatprep.subr.bf16.mxu0 %v1721
    %2114 = vmatpush1.bf16.msra.mxu0 %v1720
    %2115 = vmatprep.subr.bf16.mxu0 %v1717
    %2116 = vmatpush1.bf16.msra.mxu0 %v1716
    %2117 = vmatprep.subr.bf16.mxu0 %v1713
    %2118 = vmatpush1.bf16.msra.mxu0 %v1712
    %2119 = vmatprep.subr.bf16.mxu0 %v1709
    %2120 = vmatpush1.bf16.msra.mxu0 %v1708
    %2121 = vmatprep.subr.bf16.mxu0 0
    %2122 = vmatpush2.bf16.msra.mxu0 0
    %2123 = vmatprep.subr.bf16.mxu0 0
    %2124 = vmatpush2.bf16.msra.mxu0 0
    %2125 = vmatprep.subr.bf16.mxu0 0
    %2126 = vmatpush2.bf16.msra.mxu0 0
    %2127 = vmatprep.subr.bf16.mxu0 0
    %2128 = vmatpush2.bf16.msra.mxu0 0
    %2129 = vmatprep.subr.bf16.mxu0 0
    %2130 = vmatpush2.bf16.msra.mxu0 0
    %2131 = vmatprep.subr.bf16.mxu0 0
    %2132 = vmatpush2.bf16.msra.mxu0 0
    %2133 = vmatprep.subr.bf16.mxu0 0
    %2134 = vmatpush2.bf16.msra.mxu0 0
    %2135 = vmatprep.subr.bf16.mxu0 0
    %2136 = vmatpush2.bf16.msra.mxu0 0
    %2137 = vmatprep.mubr.bf16.mxu0 0
    %2138 = vmatmul.mubr.bf16.gmra.mxu0 %v2104
    %v2139 = vpop.f32.mrf.mxu0
    %v2140 = vadd.f32 0.0, %v2139
    %v2141 = vpop.f32.mrf.mxu0
    %v2142 = vadd.f32 0.0, %v2141
    %v2143 = vpop.f32.mrf.mxu0
    %v2144 = vpop.f32.mrf.mxu0
    %2145 = vdwg.mxu0
    %2146 = vmatprep.subr.bf16.mxu0 %v1739
    %2147 = vmatpush1.bf16.msra.mxu0 %v1738
    %2148 = vmatprep.subr.bf16.mxu0 %v1735
    %2149 = vmatpush1.bf16.msra.mxu0 %v1734
    %2150 = vmatprep.subr.bf16.mxu0 %v1731
    %2151 = vmatpush1.bf16.msra.mxu0 %v1730
    %2152 = vmatprep.subr.bf16.mxu0 %v1727
    %2153 = vmatpush1.bf16.msra.mxu0 %v1726
    %2154 = vmatprep.subr.bf16.mxu0 %v1723
    %2155 = vmatpush1.bf16.msra.mxu0 %v1722
    %2156 = vmatprep.subr.bf16.mxu0 %v1719
    %2157 = vmatpush1.bf16.msra.mxu0 %v1718
    %2158 = vmatprep.subr.bf16.mxu0 %v1715
    %2159 = vmatpush1.bf16.msra.mxu0 %v1714
    %2160 = vmatprep.subr.bf16.mxu0 %v1711
    %2161 = vmatpush1.bf16.msra.mxu0 %v1710
    %2162 = vmatprep.subr.bf16.mxu0 0
    %2163 = vmatpush2.bf16.msra.mxu0 0
    %2164 = vmatprep.subr.bf16.mxu0 0
    %2165 = vmatpush2.bf16.msra.mxu0 0
    %2166 = vmatprep.subr.bf16.mxu0 0
    %2167 = vmatpush2.bf16.msra.mxu0 0
    %2168 = vmatprep.subr.bf16.mxu0 0
    %2169 = vmatpush2.bf16.msra.mxu0 0
    %2170 = vmatprep.subr.bf16.mxu0 0
    %2171 = vmatpush2.bf16.msra.mxu0 0
    %2172 = vmatprep.subr.bf16.mxu0 0
    %2173 = vmatpush2.bf16.msra.mxu0 0
    %2174 = vmatprep.subr.bf16.mxu0 0
    %2175 = vmatpush2.bf16.msra.mxu0 0
    %2176 = vmatprep.subr.bf16.mxu0 0
    %2177 = vmatpush2.bf16.msra.mxu0 0
    %2178 = vmatprep.mubr.bf16.mxu0 0
    %2179 = vmatmul.mubr.bf16.gmra.mxu0 %v2104
    %v2180 = vpop.f32.mrf.mxu0
    %v2181 = vadd.f32 0.0, %v2180
    %v2182 = vpop.f32.mrf.mxu0
    %v2183 = vadd.f32 0.0, %v2182
    %v2184 = vpop.f32.mrf.mxu0
    %v2185 = vpop.f32.mrf.mxu0
    %2186 = vdwg.mxu0
    %v2187 = vadd.f32 %v1506, %v2140
    %v2188 = vadd.f32 %v1508, %v2142
    %v2189 = vadd.f32 %v1547, %v2181
    %v2190 = vadd.f32 %v1549, %v2183
    %v2191 = vxor.u32 %v2187, 2147483648
    %v2192 = vxor.u32 %v2188, 2147483648
    %v2193 = vxor.u32 %v2189, 2147483648
    %v2194 = vmul.f32 %v2191, 1.442695
    %v2195 = vpow.pop %v2194
    %v2196 = vmul.f32 %v2192, 1.442695
    %v2197 = vpow.pop %v2196
    %v2198 = vmul.f32 %v2193, 1.442695
    %v2199 = vpow.pop %v2198
    %v2200 = vadd.f32 %v2195, 1.0
    %v2201 = vadd.f32 %v2197, 1.0
    %v2202 = vadd.f32 %v2199, 1.0
    %v2203 = vrcp.pop %v2200
    %v2204 = vmul.f32 1.0, %v2203
    %v2205 = vrcp.pop %v2201
    %v2206 = vmul.f32 1.0, %v2205
    %v2207 = vrcp.pop %v2202
    %v2208 = vmul.f32 1.0, %v2207
    %v2209 = vtanh.pop %v2190
    %v2210 = vmul.f32 %v2206, %v2101
    %v2211 = vmul.f32 %v2204, %v2209
    %v2212 = vadd.f32 %v2210, %v2211
    %v2213 = vtanh.pop %v2212
    %v2214 = vmul.f32 %v2208, %v2213
    %v2215 = vpack.c.bf16 %v2214, %v2214
    %2216 = vmatprep.subr.bf16.mxu0 %v1737
    %2217 = vmatpush1.bf16.msra.mxu0 %v1736
    %2218 = vmatprep.subr.bf16.mxu0 %v1733
    %2219 = vmatpush1.bf16.msra.mxu0 %v1732
    %2220 = vmatprep.subr.bf16.mxu0 %v1729
    %2221 = vmatpush1.bf16.msra.mxu0 %v1728
    %2222 = vmatprep.subr.bf16.mxu0 %v1725
    %2223 = vmatpush1.bf16.msra.mxu0 %v1724
    %2224 = vmatprep.subr.bf16.mxu0 %v1721
    %2225 = vmatpush1.bf16.msra.mxu0 %v1720
    %2226 = vmatprep.subr.bf16.mxu0 %v1717
    %2227 = vmatpush1.bf16.msra.mxu0 %v1716
    %2228 = vmatprep.subr.bf16.mxu0 %v1713
    %2229 = vmatpush1.bf16.msra.mxu0 %v1712
    %2230 = vmatprep.subr.bf16.mxu0 %v1709
    %2231 = vmatpush1.bf16.msra.mxu0 %v1708
    %2232 = vmatprep.subr.bf16.mxu0 0
    %2233 = vmatpush2.bf16.msra.mxu0 0
    %2234 = vmatprep.subr.bf16.mxu0 0
    %2235 = vmatpush2.bf16.msra.mxu0 0
    %2236 = vmatprep.subr.bf16.mxu0 0
    %2237 = vmatpush2.bf16.msra.mxu0 0
    %2238 = vmatprep.subr.bf16.mxu0 0
    %2239 = vmatpush2.bf16.msra.mxu0 0
    %2240 = vmatprep.subr.bf16.mxu0 0
    %2241 = vmatpush2.bf16.msra.mxu0 0
    %2242 = vmatprep.subr.bf16.mxu0 0
    %2243 = vmatpush2.bf16.msra.mxu0 0
    %2244 = vmatprep.subr.bf16.mxu0 0
    %2245 = vmatpush2.bf16.msra.mxu0 0
    %2246 = vmatprep.subr.bf16.mxu0 0
    %2247 = vmatpush2.bf16.msra.mxu0 0
    %2248 = vmatprep.mubr.bf16.mxu0 0
    %2249 = vmatmul.mubr.bf16.gmra.mxu0 %v2215
    %v2250 = vpop.f32.mrf.mxu0
    %v2251 = vadd.f32 0.0, %v2250
    %v2252 = vpop.f32.mrf.mxu0
    %v2253 = vadd.f32 0.0, %v2252
    %v2254 = vpop.f32.mrf.mxu0
    %v2255 = vpop.f32.mrf.mxu0
    %2256 = vdwg.mxu0
    %2257 = vmatprep.subr.bf16.mxu0 %v1739
    %2258 = vmatpush1.bf16.msra.mxu0 %v1738
    %2259 = vmatprep.subr.bf16.mxu0 %v1735
    %2260 = vmatpush1.bf16.msra.mxu0 %v1734
    %2261 = vmatprep.subr.bf16.mxu0 %v1731
    %2262 = vmatpush1.bf16.msra.mxu0 %v1730
    %2263 = vmatprep.subr.bf16.mxu0 %v1727
    %2264 = vmatpush1.bf16.msra.mxu0 %v1726
    %2265 = vmatprep.subr.bf16.mxu0 %v1723
    %2266 = vmatpush1.bf16.msra.mxu0 %v1722
    %2267 = vmatprep.subr.bf16.mxu0 %v1719
    %2268 = vmatpush1.bf16.msra.mxu0 %v1718
    %2269 = vmatprep.subr.bf16.mxu0 %v1715
    %2270 = vmatpush1.bf16.msra.mxu0 %v1714
    %2271 = vmatprep.subr.bf16.mxu0 %v1711
    %2272 = vmatpush1.bf16.msra.mxu0 %v1710
    %2273 = vmatprep.subr.bf16.mxu0 0
    %2274 = vmatpush2.bf16.msra.mxu0 0
    %2275 = vmatprep.subr.bf16.mxu0 0
    %2276 = vmatpush2.bf16.msra.mxu0 0
    %2277 = vmatprep.subr.bf16.mxu0 0
    %2278 = vmatpush2.bf16.msra.mxu0 0
    %2279 = vmatprep.subr.bf16.mxu0 0
    %2280 = vmatpush2.bf16.msra.mxu0 0
    %2281 = vmatprep.subr.bf16.mxu0 0
    %2282 = vmatpush2.bf16.msra.mxu0 0
    %2283 = vmatprep.subr.bf16.mxu0 0
    %2284 = vmatpush2.bf16.msra.mxu0 0
    %2285 = vmatprep.subr.bf16.mxu0 0
    %2286 = vmatpush2.bf16.msra.mxu0 0
    %2287 = vmatprep.subr.bf16.mxu0 0
    %2288 = vmatpush2.bf16.msra.mxu0 0
    %2289 = vmatprep.mubr.bf16.mxu0 0
    %2290 = vmatmul.mubr.bf16.gmra.mxu0 %v2215
    %v2291 = vpop.f32.mrf.mxu0
    %v2292 = vadd.f32 0.0, %v2291
    %v2293 = vpop.f32.mrf.mxu0
    %v2294 = vadd.f32 0.0, %v2293
    %v2295 = vpop.f32.mrf.mxu0
    %v2296 = vpop.f32.mrf.mxu0
    %2297 = vdwg.mxu0
    %v2298 = vadd.f32 %v1506, %v2251
    %v2299 = vadd.f32 %v1508, %v2253
    %v2300 = vadd.f32 %v1547, %v2292
    %v2301 = vadd.f32 %v1549, %v2294
    %v2302 = vxor.u32 %v2298, 2147483648
    %v2303 = vxor.u32 %v2299, 2147483648
    %v2304 = vxor.u32 %v2300, 2147483648
    %v2305 = vmul.f32 %v2302, 1.442695
    %v2306 = vpow.pop %v2305
    %v2307 = vmul.f32 %v2303, 1.442695
    %v2308 = vpow.pop %v2307
    %v2309 = vmul.f32 %v2304, 1.442695
    %v2310 = vpow.pop %v2309
    %v2311 = vadd.f32 %v2306, 1.0
    %v2312 = vadd.f32 %v2308, 1.0
    %v2313 = vadd.f32 %v2310, 1.0
    %v2314 = vrcp.pop %v2311
    %v2315 = vmul.f32 1.0, %v2314
    %v2316 = vrcp.pop %v2312
    %v2317 = vmul.f32 1.0, %v2316
    %v2318 = vrcp.pop %v2313
    %v2319 = vmul.f32 1.0, %v2318
    %v2320 = vtanh.pop %v2301
    %v2321 = vmul.f32 %v2317, %v2212
    %v2322 = vmul.f32 %v2315, %v2320
    %v2323 = vadd.f32 %v2321, %v2322
    %v2324 = vtanh.pop %v2323
    %v2325 = vmul.f32 %v2319, %v2324
    %v2326 = vpack.c.bf16 %v2325, %v2325
    %2327 = vmatprep.subr.bf16.mxu0 %v1737
    %2328 = vmatpush1.bf16.msra.mxu0 %v1736
    %2329 = vmatprep.subr.bf16.mxu0 %v1733
    %2330 = vmatpush1.bf16.msra.mxu0 %v1732
    %2331 = vmatprep.subr.bf16.mxu0 %v1729
    %2332 = vmatpush1.bf16.msra.mxu0 %v1728
    %2333 = vmatprep.subr.bf16.mxu0 %v1725
    %2334 = vmatpush1.bf16.msra.mxu0 %v1724
    %2335 = vmatprep.subr.bf16.mxu0 %v1721
    %2336 = vmatpush1.bf16.msra.mxu0 %v1720
    %2337 = vmatprep.subr.bf16.mxu0 %v1717
    %2338 = vmatpush1.bf16.msra.mxu0 %v1716
    %2339 = vmatprep.subr.bf16.mxu0 %v1713
    %2340 = vmatpush1.bf16.msra.mxu0 %v1712
    %2341 = vmatprep.subr.bf16.mxu0 %v1709
    %2342 = vmatpush1.bf16.msra.mxu0 %v1708
    %2343 = vmatprep.subr.bf16.mxu0 0
    %2344 = vmatpush2.bf16.msra.mxu0 0
    %2345 = vmatprep.subr.bf16.mxu0 0
    %2346 = vmatpush2.bf16.msra.mxu0 0
    %2347 = vmatprep.subr.bf16.mxu0 0
    %2348 = vmatpush2.bf16.msra.mxu0 0
    %2349 = vmatprep.subr.bf16.mxu0 0
    %2350 = vmatpush2.bf16.msra.mxu0 0
    %2351 = vmatprep.subr.bf16.mxu0 0
    %2352 = vmatpush2.bf16.msra.mxu0 0
    %2353 = vmatprep.subr.bf16.mxu0 0
    %2354 = vmatpush2.bf16.msra.mxu0 0
    %2355 = vmatprep.subr.bf16.mxu0 0
    %2356 = vmatpush2.bf16.msra.mxu0 0
    %2357 = vmatprep.subr.bf16.mxu0 0
    %2358 = vmatpush2.bf16.msra.mxu0 0
    %2359 = vmatprep.mubr.bf16.mxu0 0
    %2360 = vmatmul.mubr.bf16.gmra.mxu0 %v2326
    %v2361 = vpop.f32.mrf.mxu0
    %v2362 = vadd.f32 0.0, %v2361
    %v2363 = vpop.f32.mrf.mxu0
    %v2364 = vadd.f32 0.0, %v2363
    %v2365 = vpop.f32.mrf.mxu0
    %v2366 = vpop.f32.mrf.mxu0
    %2367 = vdwg.mxu0
    %2368 = vmatprep.subr.bf16.mxu0 %v1739
    %2369 = vmatpush1.bf16.msra.mxu0 %v1738
    %2370 = vmatprep.subr.bf16.mxu0 %v1735
    %2371 = vmatpush1.bf16.msra.mxu0 %v1734
    %2372 = vmatprep.subr.bf16.mxu0 %v1731
    %2373 = vmatpush1.bf16.msra.mxu0 %v1730
    %2374 = vmatprep.subr.bf16.mxu0 %v1727
    %2375 = vmatpush1.bf16.msra.mxu0 %v1726
    %2376 = vmatprep.subr.bf16.mxu0 %v1723
    %2377 = vmatpush1.bf16.msra.mxu0 %v1722
    %2378 = vmatprep.subr.bf16.mxu0 %v1719
    %2379 = vmatpush1.bf16.msra.mxu0 %v1718
    %2380 = vmatprep.subr.bf16.mxu0 %v1715
    %2381 = vmatpush1.bf16.msra.mxu0 %v1714
    %2382 = vmatprep.subr.bf16.mxu0 %v1711
    %2383 = vmatpush1.bf16.msra.mxu0 %v1710
    %2384 = vmatprep.subr.bf16.mxu0 0
    %2385 = vmatpush2.bf16.msra.mxu0 0
    %2386 = vmatprep.subr.bf16.mxu0 0
    %2387 = vmatpush2.bf16.msra.mxu0 0
    %2388 = vmatprep.subr.bf16.mxu0 0
    %2389 = vmatpush2.bf16.msra.mxu0 0
    %2390 = vmatprep.subr.bf16.mxu0 0
    %2391 = vmatpush2.bf16.msra.mxu0 0
    %2392 = vmatprep.subr.bf16.mxu0 0
    %2393 = vmatpush2.bf16.msra.mxu0 0
    %2394 = vmatprep.subr.bf16.mxu0 0
    %2395 = vmatpush2.bf16.msra.mxu0 0
    %2396 = vmatprep.subr.bf16.mxu0 0
    %2397 = vmatpush2.bf16.msra.mxu0 0
    %2398 = vmatprep.subr.bf16.mxu0 0
    %2399 = vmatpush2.bf16.msra.mxu0 0
    %2400 = vmatprep.mubr.bf16.mxu0 0
    %2401 = vmatmul.mubr.bf16.gmra.mxu0 %v2326
    %v2402 = vpop.f32.mrf.mxu0
    %v2403 = vadd.f32 0.0, %v2402
    %v2404 = vpop.f32.mrf.mxu0
    %v2405 = vadd.f32 0.0, %v2404
    %v2406 = vpop.f32.mrf.mxu0
    %v2407 = vpop.f32.mrf.mxu0
    %2408 = vdwg.mxu0
    %v2409 = vadd.f32 %v1506, %v2362
    %v2410 = vadd.f32 %v1508, %v2364
    %v2411 = vadd.f32 %v1547, %v2403
    %v2412 = vadd.f32 %v1549, %v2405
    %v2413 = vxor.u32 %v2409, 2147483648
    %v2414 = vxor.u32 %v2410, 2147483648
    %v2415 = vxor.u32 %v2411, 2147483648
    %v2416 = vmul.f32 %v2413, 1.442695
    %v2417 = vpow.pop %v2416
    %v2418 = vmul.f32 %v2414, 1.442695
    %v2419 = vpow.pop %v2418
    %v2420 = vmul.f32 %v2415, 1.442695
    %v2421 = vpow.pop %v2420
    %v2422 = vadd.f32 %v2417, 1.0
    %v2423 = vadd.f32 %v2419, 1.0
    %v2424 = vadd.f32 %v2421, 1.0
    %v2425 = vrcp.pop %v2422
    %v2426 = vmul.f32 1.0, %v2425
    %v2427 = vrcp.pop %v2423
    %v2428 = vmul.f32 1.0, %v2427
    %v2429 = vrcp.pop %v2424
    %v2430 = vmul.f32 1.0, %v2429
    %v2431 = vtanh.pop %v2412
    %v2432 = vmul.f32 %v2428, %v2323
    %v2433 = vmul.f32 %v2426, %v2431
    %v2434 = vadd.f32 %v2432, %v2433
    %v2435 = vtanh.pop %v2434
    %v2436 = vmul.f32 %v2430, %v2435
    %v2437 = vpack.c.bf16 %v2436, %v2436
    %2438 = vmatprep.subr.bf16.mxu0 %v1737
    %2439 = vmatpush1.bf16.msra.mxu0 %v1736
    %2440 = vmatprep.subr.bf16.mxu0 %v1733
    %2441 = vmatpush1.bf16.msra.mxu0 %v1732
    %2442 = vmatprep.subr.bf16.mxu0 %v1729
    %2443 = vmatpush1.bf16.msra.mxu0 %v1728
    %2444 = vmatprep.subr.bf16.mxu0 %v1725
    %2445 = vmatpush1.bf16.msra.mxu0 %v1724
    %2446 = vmatprep.subr.bf16.mxu0 %v1721
    %2447 = vmatpush1.bf16.msra.mxu0 %v1720
    %2448 = vmatprep.subr.bf16.mxu0 %v1717
    %2449 = vmatpush1.bf16.msra.mxu0 %v1716
    %2450 = vmatprep.subr.bf16.mxu0 %v1713
    %2451 = vmatpush1.bf16.msra.mxu0 %v1712
    %2452 = vmatprep.subr.bf16.mxu0 %v1709
    %2453 = vmatpush1.bf16.msra.mxu0 %v1708
    %2454 = vmatprep.subr.bf16.mxu0 0
    %2455 = vmatpush2.bf16.msra.mxu0 0
    %2456 = vmatprep.subr.bf16.mxu0 0
    %2457 = vmatpush2.bf16.msra.mxu0 0
    %2458 = vmatprep.subr.bf16.mxu0 0
    %2459 = vmatpush2.bf16.msra.mxu0 0
    %2460 = vmatprep.subr.bf16.mxu0 0
    %2461 = vmatpush2.bf16.msra.mxu0 0
    %2462 = vmatprep.subr.bf16.mxu0 0
    %2463 = vmatpush2.bf16.msra.mxu0 0
    %2464 = vmatprep.subr.bf16.mxu0 0
    %2465 = vmatpush2.bf16.msra.mxu0 0
    %2466 = vmatprep.subr.bf16.mxu0 0
    %2467 = vmatpush2.bf16.msra.mxu0 0
    %2468 = vmatprep.subr.bf16.mxu0 0
    %2469 = vmatpush2.bf16.msra.mxu0 0
    %2470 = vmatprep.mubr.bf16.mxu0 0
    %2471 = vmatmul.mubr.bf16.gmra.mxu0 %v2437
    %v2472 = vpop.f32.mrf.mxu0
    %v2473 = vadd.f32 0.0, %v2472
    %v2474 = vpop.f32.mrf.mxu0
    %v2475 = vadd.f32 0.0, %v2474
    %v2476 = vpop.f32.mrf.mxu0
    %v2477 = vpop.f32.mrf.mxu0
    %2478 = vdwg.mxu0
    %2479 = vmatprep.subr.bf16.mxu0 %v1739
    %2480 = vmatpush1.bf16.msra.mxu0 %v1738
    %2481 = vmatprep.subr.bf16.mxu0 %v1735
    %2482 = vmatpush1.bf16.msra.mxu0 %v1734
    %2483 = vmatprep.subr.bf16.mxu0 %v1731
    %2484 = vmatpush1.bf16.msra.mxu0 %v1730
    %2485 = vmatprep.subr.bf16.mxu0 %v1727
    %2486 = vmatpush1.bf16.msra.mxu0 %v1726
    %2487 = vmatprep.subr.bf16.mxu0 %v1723
    %2488 = vmatpush1.bf16.msra.mxu0 %v1722
    %2489 = vmatprep.subr.bf16.mxu0 %v1719
    %2490 = vmatpush1.bf16.msra.mxu0 %v1718
    %2491 = vmatprep.subr.bf16.mxu0 %v1715
    %2492 = vmatpush1.bf16.msra.mxu0 %v1714
    %2493 = vmatprep.subr.bf16.mxu0 %v1711
    %2494 = vmatpush1.bf16.msra.mxu0 %v1710
    %2495 = vmatprep.subr.bf16.mxu0 0
    %2496 = vmatpush2.bf16.msra.mxu0 0
    %2497 = vmatprep.subr.bf16.mxu0 0
    %2498 = vmatpush2.bf16.msra.mxu0 0
    %2499 = vmatprep.subr.bf16.mxu0 0
    %2500 = vmatpush2.bf16.msra.mxu0 0
    %2501 = vmatprep.subr.bf16.mxu0 0
    %2502 = vmatpush2.bf16.msra.mxu0 0
    %2503 = vmatprep.subr.bf16.mxu0 0
    %2504 = vmatpush2.bf16.msra.mxu0 0
    %2505 = vmatprep.subr.bf16.mxu0 0
    %2506 = vmatpush2.bf16.msra.mxu0 0
    %2507 = vmatprep.subr.bf16.mxu0 0
    %2508 = vmatpush2.bf16.msra.mxu0 0
    %2509 = vmatprep.subr.bf16.mxu0 0
    %2510 = vmatpush2.bf16.msra.mxu0 0
    %2511 = vmatprep.mubr.bf16.mxu0 0
    %2512 = vmatmul.mubr.bf16.gmra.mxu0 %v2437
    %v2513 = vpop.f32.mrf.mxu0
    %v2514 = vadd.f32 0.0, %v2513
    %v2515 = vpop.f32.mrf.mxu0
    %v2516 = vadd.f32 0.0, %v2515
    %v2517 = vpop.f32.mrf.mxu0
    %v2518 = vpop.f32.mrf.mxu0
    %2519 = vdwg.mxu0
    %v2520 = vadd.f32 %v1506, %v2473
    %v2521 = vadd.f32 %v1508, %v2475
    %v2522 = vadd.f32 %v1547, %v2514
    %v2523 = vadd.f32 %v1549, %v2516
    %v2524 = vxor.u32 %v2520, 2147483648
    %v2525 = vxor.u32 %v2521, 2147483648
    %v2526 = vxor.u32 %v2522, 2147483648
    %v2527 = vmul.f32 %v2524, 1.442695
    %v2528 = vpow.pop %v2527
    %v2529 = vmul.f32 %v2525, 1.442695
    %v2530 = vpow.pop %v2529
    %v2531 = vmul.f32 %v2526, 1.442695
    %v2532 = vpow.pop %v2531
    %v2533 = vadd.f32 %v2528, 1.0
    %v2534 = vadd.f32 %v2530, 1.0
    %v2535 = vadd.f32 %v2532, 1.0
    %v2536 = vrcp.pop %v2533
    %v2537 = vmul.f32 1.0, %v2536
    %v2538 = vrcp.pop %v2534
    %v2539 = vmul.f32 1.0, %v2538
    %v2540 = vrcp.pop %v2535
    %v2541 = vmul.f32 1.0, %v2540
    %v2542 = vtanh.pop %v2523
    %v2543 = vmul.f32 %v2539, %v2434
    %v2544 = vmul.f32 %v2537, %v2542
    %v2545 = vadd.f32 %v2543, %v2544
    %v2546 = vtanh.pop %v2545
    %v2547 = vmul.f32 %v2541, %v2546
    %v2549 = vrot.slane %v1881, 7
    %v2552 = vrot.slane %v1992, 6
    %v2555 = vrot.slane %v2103, 5
    %v2558 = vrot.slane %v2214, 4
    %v2561 = vrot.slane %v2325, 3
    %v2564 = vrot.slane %v2436, 2
    %v2567 = vrot.slane %v2547, 1
    %vm2569 = vcmask 1040384
    %v2570 = vsel %vm2569, %v1576, %v2549
    %vm2571 = vcmask 1041408
    %v2572 = vsel %vm2571, %v2570, %v2552
    %vm2573 = vcmask 1042432
    %v2574 = vsel %vm2573, %v2572, %v2555
    %vm2575 = vcmask 1043456
    %v2576 = vsel %vm2575, %v2574, %v2558
    %vm2577 = vcmask 1044480
    %v2578 = vsel %vm2577, %v2576, %v2561
    %vm2579 = vcmask 1045504
    %v2580 = vsel %vm2579, %v2578, %v2564
    %vm2581 = vcmask 1046528
    %v2582 = vsel %vm2581, %v2580, %v2567
    %v2583 = vld [vmem:[%s7] sm:$0x1]
    %v2585 = vlaneseq
    %v2586 = vshrl.u32 %v2585, 7
    %v2587 = vsub.s32 0, %v2586
    %v2588 = vrot.slane %v2583, %v2587
    %v2590 = vmul.f32 %v2582, %v2588
    %2591 = vadd.xlane.f32.xlu0 %v2590
    %v2592 = vpop.xlane.xlu0 %2591
    %v2593 = vld [vmem:[#allocation5] sm:$0x1]
    %v2595 = vlaneseq
    %v2596 = vshrl.u32 %v2595, 7
    %v2597 = vsub.s32 0, %v2596
    %v2598 = vrot.slane %v2593, %v2597
    %v2600 = vadd.f32 %v2592, %v2598
    %vm2601 = vcmask 7168
    %2602 = vst.msk [vmem:[%s9] sm:$0xff] %vm2601, %v2600
    // Predicated region
    $region42: #{tpu_custom_call.1} parent=1 // pred_check
      _
    $region43: #{tpu_custom_call.1} parent=1 // pred_check_branch
      %2604 = sbr.rel (0) target = $region45
    $region44: #{tpu_custom_call.1} parent=1 // pred_region
      _
    $region45: #{tpu_custom_call.1} parent=1 // pred_fallthru
      _
    // Predicated region
    $region46: #{tpu_custom_call.1} parent=1 // pred_check
      _
    $region47: #{tpu_custom_call.1} parent=1 // pred_check_branch
      %2606 = sbr.rel (0) target = $region49
    $region48: #{tpu_custom_call.1} parent=1 // pred_region
      _
    $region49: #{tpu_custom_call.1} parent=1 // pred_fallthru
      _
    %2607 = vsyncpa [#allocation7], 1
  %2608 = vsyncmov [#allocation4]
  %s2609 = vpop.sfrf %2608
  %p2610 = scmp.eq.s32.totalorder %s2609, 0
  %p2611 = pneg %p2610
  %2613 = shalt.err (%p2611)
  %s2614 = scalar_lea.sflag [#allocation4], 1
  %2615 = vsyncmov %s2614
  %s2616 = vpop.sfrf %2615
  %p2617 = scmp.eq.s32.totalorder %s2616, 0
  %p2618 = pneg %p2617
  %2620 = shalt.err (%p2618)

</llo_original>
